<compile_context>
chip_gen: v6e
topology: v6e:2x2x1
jax: 0.10.0
libtpu: 0.0.40
codegen_flags: <defaults>
</compile_context>

<pallas_src>
import math
import functools

import jax
import jax.numpy as jnp
from jax import lax
from jax.experimental import pallas as pl
from jax.experimental.pallas import tpu as pltpu


# ---------------------------------------------------------------------------
# Position embedding (batch-independent since mask=None; computed once)
# ---------------------------------------------------------------------------
def position_embedding_sine(batch, h, w, num_pos_feats, temperature=10000.0):
    """PositionEmbeddingSine(num_pos_feats, normalize=True) with mask=None."""
    scale = 2.0 * math.pi
    eps = 1e-6
    ones = jnp.ones((batch, h, w), jnp.float32)
    y_embed = jnp.cumsum(ones, axis=1)
    x_embed = jnp.cumsum(ones, axis=2)
    y_embed = y_embed / (y_embed[:, -1:, :] + eps) * scale
    x_embed = x_embed / (x_embed[:, :, -1:] + eps) * scale

    dim_i = jnp.arange(num_pos_feats)
    dim_t = temperature ** (2.0 * (dim_i // 2).astype(jnp.float32) / num_pos_feats)

    pos_x = x_embed[..., None] / dim_t            # (B, H, W, F)
    pos_y = y_embed[..., None] / dim_t
    pos_x = jnp.stack(
        [jnp.sin(pos_x[..., 0::2]), jnp.cos(pos_x[..., 1::2])], axis=4
    ).reshape(batch, h, w, num_pos_feats)
    pos_y = jnp.stack(
        [jnp.sin(pos_y[..., 0::2]), jnp.cos(pos_y[..., 1::2])], axis=4
    ).reshape(batch, h, w, num_pos_feats)
    pos = jnp.concatenate([pos_y, pos_x], axis=3)  # (B, H, W, 2F)
    return pos.transpose(0, 3, 1, 2)               # (B, E, H, W)


# ---------------------------------------------------------------------------
# Pallas kernel: one (batch b, KV-tile si) step of ShortCut_CrossAttention
# ---------------------------------------------------------------------------
def _cdt_kernel(nhead, hd, ln_eps,
                mem_ref,    # (1, E, Sk)      image features tile, channel-major
                kpos_ref,   # (E, Sk)         Wk @ pos + bk  (precomputed, f32)
                q_ref,      # (nhead, T, hd)  scaled queries (constant block)
                tgt_ref,    # (T, E)          residual input (constant block)
                wkv_ref,    # (2E, E)         rows [0:E]=Wk, [E:2E]=Wv (stacked)
                wproj_ref,  # (nhead, hd, E)  fused (Wo^T @ Wm^T), f32
                vec_ref,    # (8, E)          row0 fused bias, row1 gamma, row2 beta
                out_ref,    # (1, T, E)
                m_ref,      # (nhead, T, 1)   running max     (VMEM scratch)
                l_ref,      # (nhead, T, 1)   running sum     (VMEM scratch)
                acc_ref):   # (nhead, T, hd)  running p@V     (VMEM scratch)
    si = pl.program_id(1)
    E = wkv_ref.shape[1]

    @pl.when(si == 0)
    def _init():
        m_ref[...] = jnp.full_like(m_ref, -jnp.inf)
        l_ref[...] = jnp.zeros_like(l_ref)
        acc_ref[...] = jnp.zeros_like(acc_ref)

    mem = mem_ref[0]                                            # (E, Sk)
    # Single fused MXU matmul producing K^T and V^T for this KV tile (all heads
    # at once).  Channel-major mem means no transposes are needed anywhere.
    kv = jnp.dot(wkv_ref[...], mem,
                 preferred_element_type=jnp.float32)            # (2E, Sk) f32
    kT = (kv[:E, :] + kpos_ref[...]).astype(mem.dtype)          # (E, Sk)
    vT = kv[E:, :].astype(mem.dtype)                            # (E, Sk)

    # Per-head flash-style online softmax.  Head slices are SUBLANE slices of
    # kT/vT (offsets multiples of hd) -> no lane relayout, no .T, no concat.
    for h in range(nhead):
        lo = h * hd
        s = jnp.dot(q_ref[h], kT[lo:lo + hd, :],
                    preferred_element_type=jnp.float32)          # (T, Sk)
        m_prev = m_ref[h]                                        # (T, 1)
        m_new = jnp.maximum(m_prev, jnp.max(s, axis=-1, keepdims=True))
        alpha = jnp.exp(m_prev - m_new)
        p = jnp.exp(s - m_new)                                   # f32
        l_ref[h] = alpha * l_ref[h] + jnp.sum(p, axis=-1, keepdims=True)
        pv = lax.dot_general(p.astype(mem.dtype), vT[lo:lo + hd, :],
                             (((1,), (1,)), ((), ())),           # p @ vT_h^T
                             preferred_element_type=jnp.float32)  # (T, hd)
        acc_ref[h] = alpha * acc_ref[h] + pv
        m_ref[h] = m_new

    @pl.when(si == pl.num_programs(1) - 1)
    def _finalize():
        tgt = tgt_ref[...]                         # (T, E) f32 residual input
        mlp = vec_ref[0:1, :]                      # fused (bv, bo, bm) bias
        for h in range(nhead):
            inv_l = pl.reciprocal(l_ref[h], approx=True)         # EUP slot
            ctx_h = acc_ref[h] * inv_l                           # (T, hd) f32
            # head-concat + out_proj + MLP fused into one small matmul per head
            mlp = mlp + jnp.dot(ctx_h, wproj_ref[h],
                                preferred_element_type=jnp.float32)
        res = tgt + mlp                                          # (T, E)
        mean = jnp.mean(res, axis=-1, keepdims=True)
        var = jnp.mean((res - mean) ** 2, axis=-1, keepdims=True)
        y = (res - mean) * lax.rsqrt(var + ln_eps)
        out_ref[0] = (y * vec_ref[1:2, :] + vec_ref[2:3, :]).astype(out_ref.dtype)


# ---------------------------------------------------------------------------
# Wrapper: ContentDependentTransfer.forward
# ---------------------------------------------------------------------------
def content_dependent_transfer(img_feat, text_classifier, params, nhead,
                               *, kv_tile=None, mxu_dtype=jnp.float32,
                               ln_eps=1e-5):
    """img_feat: (B, E, H, W) NCHW;  text_classifier: (T, E)  ->  (B, T, E)."""
    B, E, H, W = img_feat.shape
    T = text_classifier.shape[0]
    S = H * W
    assert E % nhead == 0
    hd = E // nhead

    if kv_tile is None:
        kv_tile = S if S <= 512 else 512
    assert S % kv_tile == 0 and (kv_tile == S or kv_tile % 128 == 0), \
        "kv_tile must divide S and be a multiple of 128 (or the full S)"
    n_kv = S // kv_tile

    # ---- batch-independent precompute (plain JAX, done once) ----
    # Channel-major (B, E, S) is a free reshape of NCHW: no HBM transpose.
    mem = img_feat.reshape(B, E, S).astype(mxu_dtype)

    # pos is identical for every batch (mask=None) -> fold through Wk once.
    pos = position_embedding_sine(1, H, W, E // 2)[0].reshape(E, S)       # (E, S)
    kposT = (params["wk"] @ pos + params["bk"][:, None]).astype(jnp.float32)

    # Q depends only on the text classifier: compute once, head-major, with the
    # 1/sqrt(hd) softmax scale folded in.
    q = (text_classifier @ params["wq"].T + params["bq"]) * (1.0 / math.sqrt(hd))
    q_heads = q.reshape(T, nhead, hd).transpose(1, 0, 2).astype(mxu_dtype)  # (nhead,T,hd)

    # Wk and Wv stacked -> one MXU matmul per KV tile produces K^T and V^T.
    wkv = jnp.concatenate([params["wk"], params["wv"]], axis=0).astype(mxu_dtype)

    # out_proj and the MLP Linear are consecutive linears -> fold.  bv passes
    # through softmax unchanged (attention rows sum to 1) -> fold into bias.
    wproj = (params["wo"].T @ params["wm"].T).reshape(nhead, hd, E).astype(jnp.float32)
    bias_fused = ((params["bv"] @ params["wo"].T + params["bo"]) @ params["wm"].T
                  + params["bm"])

    # Pack the remaining per-channel vectors into one tile-aligned (8, E) block.
    vecs = jnp.zeros((8, E), jnp.float32)
    vecs = vecs.at[0].set(bias_fused).at[1].set(params["g"]).at[2].set(params["b"])

    tgt = text_classifier.astype(jnp.float32)                              # (T, E)

    # Constant-index blocks (q, tgt, weights, vecs) are DMA'd once and stay
    # resident across the whole grid.  kposT re-streams per batch only.
    kernel = functools.partial(_cdt_kernel, nhead, hd, ln_eps)
    out = pl.pallas_call(
        kernel,
        out_shape=jax.ShapeDtypeStruct((B, T, E), jnp.float32),
        grid=(B, n_kv),
        in_specs=[
            pl.BlockSpec((1, E, kv_tile), lambda b, s: (b, 0, s)),   # mem tile
            pl.BlockSpec((E, kv_tile), lambda b, s: (0, s)),         # kposT tile
            pl.BlockSpec((nhead, T, hd), lambda b, s: (0, 0, 0)),    # q (const)
            pl.BlockSpec((T, E), lambda b, s: (0, 0)),               # tgt (const)
            pl.BlockSpec((2 * E, E), lambda b, s: (0, 0)),           # Wk|Wv stacked
            pl.BlockSpec((nhead, hd, E), lambda b, s: (0, 0, 0)),    # Wproj
            pl.BlockSpec((8, E), lambda b, s: (0, 0)),               # packed vecs
        ],
        out_specs=pl.BlockSpec((1, T, E), lambda b, s: (b, 0, 0)),
        scratch_shapes=[
            pltpu.VMEM((nhead, T, 1), jnp.float32),    # running max
            pltpu.VMEM((nhead, T, 1), jnp.float32),    # running sum
            pltpu.VMEM((nhead, T, hd), jnp.float32),   # running p@V accumulator
        ],
        # batch axis parallel (megacore); KV axis is the flash reduction.
        compiler_params=pltpu.CompilerParams(
            dimension_semantics=("parallel", "arbitrary")),
    )(mem, kposT, q_heads, tgt, wkv, wproj, vecs)
    return out


# ---------------------------------------------------------------------------
# Pure-JAX reference (mirrors torch nn.MultiheadAttention math, unfused)
# ---------------------------------------------------------------------------
def reference_forward(img_feat, text_classifier, p, nhead):
    B, E, H, W = img_feat.shape
    S, T = H * W, text_classifier.shape[0]
    hd = E // nhead
    pos = position_embedding_sine(B, H, W, E // 2).reshape(B, E, S).transpose(0, 2, 1)
    mem = img_feat.reshape(B, E, S).transpose(0, 2, 1)
    tgt = jnp.broadcast_to(text_classifier[None], (B, T, E))
    q = tgt @ p["wq"].T + p["bq"]
    k = (mem + pos) @ p["wk"].T + p["bk"]
    v = mem @ p["wv"].T + p["bv"]
    qh = q.reshape(B, T, nhead, hd).transpose(0, 2, 1, 3)
    kh = k.reshape(B, S, nhead, hd).transpose(0, 2, 1, 3)
    vh = v.reshape(B, S, nhead, hd).transpose(0, 2, 1, 3)
    s = jnp.einsum("bhtd,bhsd->bhts", qh, kh) / math.sqrt(hd)
    a = jax.nn.softmax(s, axis=-1)
    ctx = jnp.einsum("bhts,bhsd->bhtd", a, vh).transpose(0, 2, 1, 3).reshape(B, T, E)
    tgt2 = ctx @ p["wo"].T + p["bo"]
    mlp = tgt2 @ p["wm"].T + p["bm"]
    res = tgt + mlp
    mean = res.mean(-1, keepdims=True)
    var = ((res - mean) ** 2).mean(-1, keepdims=True)
    return (res - mean) / jnp.sqrt(var + 1e-5) * p["g"] + p["b"]


# ---------------------------------------------------------------------------
def _xavier_uniform(key, shape):
    fan_out, fan_in = shape
    bound = math.sqrt(6.0 / (fan_in + fan_out))
    return jax.random.uniform(key, shape, jnp.float32, -bound, bound)


def init_params(key, d_model):
    ks = jax.random.split(key, 12)
    in_proj = _xavier_uniform(ks[0], (3 * d_model, d_model))     # torch in_proj_weight
    wq, wk, wv = jnp.split(in_proj, 3, axis=0)
    return {
        "wq": wq, "wk": wk, "wv": wv,
        "bq": 0.01 * jax.random.normal(ks[1], (d_model,), jnp.float32),
        "bk": 0.01 * jax.random.normal(ks[2], (d_model,), jnp.float32),
        "bv": 0.01 * jax.random.normal(ks[3], (d_model,), jnp.float32),
        "wo": _xavier_uniform(ks[4], (d_model, d_model)),        # out_proj.weight
        "bo": 0.01 * jax.random.normal(ks[5], (d_model,), jnp.float32),
        "wm": _xavier_uniform(ks[6], (d_model, d_model)),        # MLP (Linear) weight
        "bm": 0.01 * jax.random.normal(ks[7], (d_model,), jnp.float32),
        "g": jnp.ones((d_model,), jnp.float32),                  # LayerNorm weight
        "b": jnp.zeros((d_model,), jnp.float32),                 # LayerNorm bias
    }


if __name__ == "__main__":
    B, d_model, nhead = 2, 32, 4
    H = W = 16
    T = 8  # number of text-classifier tokens

    key = jax.random.PRNGKey(0)
    k_img, k_txt, k_par = jax.random.split(key, 3)
    img_feat = jax.random.normal(k_img, (B, d_model, H, W), jnp.float32)
    text_classifier = jax.random.normal(k_txt, (T, d_model), jnp.float32)
    params = init_params(k_par, d_model)

    ref = jax.block_until_ready(
        reference_forward(img_feat, text_classifier, params, nhead))

    # f32 run, kv_tile=128 exercises the flash-style online-softmax path.
    out = jax.block_until_ready(
        content_dependent_transfer(img_feat, text_classifier, params, nhead,
                                   kv_tile=128, mxu_dtype=jnp.float32))
    assert out.shape == (B, T, d_model)
    # pl.reciprocal(approx=True) is the only approximation on this path
    # (exact division reproduces the reference to ~1e-5); outputs are
    # LayerNorm-normalized O(1), so 1e-2 still catches any structural error.
    err = float(jnp.max(jnp.abs(out - ref)))
    assert jnp.allclose(out, ref, atol=1e-2, rtol=1e-2), err

    # bf16 MXU-operand run (f32 accumulation, f32 softmax/LayerNorm).
    out_bf16 = jax.block_until_ready(
        content_dependent_transfer(img_feat, text_classifier, params, nhead,
                                   kv_tile=128, mxu_dtype=jnp.bfloat16))
    err_bf16 = float(jnp.max(jnp.abs(out_bf16 - ref)))
    assert jnp.allclose(out_bf16, ref, atol=1e-1, rtol=1e-1), err_bf16

    print("KERNEL_OK")
</pallas_src>

<mosaic_0001>
module attributes {stable_mosaic.version = 11 : i64} {
  func.func @_cdt_kernel(%arg0: i32, %arg1: i32, %arg2: memref<1x32x128xf32, #tpu.memory_space<vmem>>, %arg3: memref<32x128xf32, #tpu.memory_space<vmem>>, %arg4: memref<4x8x8xf32, #tpu.memory_space<vmem>>, %arg5: memref<8x32xf32, #tpu.memory_space<vmem>>, %arg6: memref<64x32xf32, #tpu.memory_space<vmem>>, %arg7: memref<4x8x32xf32, #tpu.memory_space<vmem>>, %arg8: memref<8x32xf32, #tpu.memory_space<vmem>>, %arg9: memref<1x8x32xf32, #tpu.memory_space<vmem>>, %arg10: memref<4x8x1xf32, #tpu.memory_space<vmem>>, %arg11: memref<4x8x1xf32, #tpu.memory_space<vmem>>, %arg12: memref<4x8x8xf32, #tpu.memory_space<vmem>>) attributes {dimension_semantics = [#tpu.dimension_semantics<parallel>, #tpu.dimension_semantics<arbitrary>], iteration_bounds = array<i64: 2, 2>, scalar_prefetch = 0 : i64, scratch_operands = 3 : i64, tpu.core_type = #tpu.core_type<tc>, window_params = [{transform_indices = @transform_0, window_bounds = array<i64: 1, 32, 128>}, {transform_indices = @transform_1, window_bounds = array<i64: 32, 128>}, {pipeline_mode = #tpu.pipeline_mode<synchronous>, transform_indices = @transform_2, window_bounds = array<i64: 4, 8, 8>}, {pipeline_mode = #tpu.pipeline_mode<synchronous>, transform_indices = @transform_3, window_bounds = array<i64: 8, 32>}, {pipeline_mode = #tpu.pipeline_mode<synchronous>, transform_indices = @transform_4, window_bounds = array<i64: 64, 32>}, {pipeline_mode = #tpu.pipeline_mode<synchronous>, transform_indices = @transform_5, window_bounds = array<i64: 4, 8, 32>}, {pipeline_mode = #tpu.pipeline_mode<synchronous>, transform_indices = @transform_6, window_bounds = array<i64: 8, 32>}, {transform_indices = @transform_7, window_bounds = array<i64: 1, 8, 32>}]} {
    %c0_i32 = arith.constant 0 : i32
    %0 = arith.cmpi eq, %arg1, %c0_i32 : i32
    %1 = arith.extui %0 : i1 to i32
    %c0_i32_0 = arith.constant 0 : i32
    %2 = arith.cmpi ne, %1, %c0_i32_0 : i32
    scf.if %2 {
      %cst_105 = arith.constant 0xFF800000 : f32
      %158 = vector.broadcast %cst_105 : f32 to vector<4x8x1xf32>
      %c0_106 = arith.constant 0 : index
      %c0_107 = arith.constant 0 : index
      %c0_108 = arith.constant 0 : index
      %159 = vector.load %arg10[%c0_106, %c0_107, %c0_108] : memref<4x8x1xf32, #tpu.memory_space<vmem>>, vector<4x8x1xf32>
      tpu.vector_store %arg10[%c0_106, %c0_107, %c0_108], %158 {strides = array<i32>} : memref<4x8x1xf32, #tpu.memory_space<vmem>>, vector<4x8x1xf32>,
      %cst_109 = arith.constant 0.000000e+00 : f32
      %160 = vector.broadcast %cst_109 : f32 to vector<4x8x1xf32>
      %c0_110 = arith.constant 0 : index
      %c0_111 = arith.constant 0 : index
      %c0_112 = arith.constant 0 : index
      %161 = vector.load %arg11[%c0_110, %c0_111, %c0_112] : memref<4x8x1xf32, #tpu.memory_space<vmem>>, vector<4x8x1xf32>
      tpu.vector_store %arg11[%c0_110, %c0_111, %c0_112], %160 {strides = array<i32>} : memref<4x8x1xf32, #tpu.memory_space<vmem>>, vector<4x8x1xf32>,
      %cst_113 = arith.constant 0.000000e+00 : f32
      %162 = vector.broadcast %cst_113 : f32 to vector<4x8x8xf32>
      %c0_114 = arith.constant 0 : index
      %c0_115 = arith.constant 0 : index
      %c0_116 = arith.constant 0 : index
      %163 = vector.load %arg12[%c0_114, %c0_115, %c0_116] : memref<4x8x8xf32, #tpu.memory_space<vmem>>, vector<4x8x8xf32>
      tpu.vector_store %arg12[%c0_114, %c0_115, %c0_116], %162 {strides = array<i32>} : memref<4x8x8xf32, #tpu.memory_space<vmem>>, vector<4x8x8xf32>,
    } else {
    }
    %c0 = arith.constant 0 : index
    %c0_1 = arith.constant 0 : index
    %c0_2 = arith.constant 0 : index
    %3 = vector.load %arg2[%c0, %c0_1, %c0_2] : memref<1x32x128xf32, #tpu.memory_space<vmem>>, vector<1x32x128xf32>
    %4 = vector.shape_cast %3 : vector<1x32x128xf32> to vector<32x128xf32>
    %c0_3 = arith.constant 0 : index
    %c0_4 = arith.constant 0 : index
    %5 = vector.load %arg6[%c0_3, %c0_4] : memref<64x32xf32, #tpu.memory_space<vmem>>, vector<64x32xf32>
    %cst = arith.constant dense<0.000000e+00> : vector<64x128xf32>
    %6 = tpu.matmul %5, %4, %cst {dimension_numbers = #tpu.dot_dimension_numbers<[1], [0], [0], [1], [0, 0, 1, 1], [], []>} : vector<64x32xf32>, vector<32x128xf32>, vector<64x128xf32> -> vector<64x128xf32>
    %7 = vector.extract_strided_slice %6 {offsets = [0, 0], sizes = [32, 128], strides = [1, 1]} : vector<64x128xf32> to vector<32x128xf32>
    %c0_5 = arith.constant 0 : index
    %c0_6 = arith.constant 0 : index
    %8 = vector.load %arg3[%c0_5, %c0_6] : memref<32x128xf32, #tpu.memory_space<vmem>>, vector<32x128xf32>
    %9 = arith.addf %7, %8 : vector<32x128xf32>
    %10 = vector.extract_strided_slice %6 {offsets = [32, 0], sizes = [32, 128], strides = [1, 1]} : vector<64x128xf32> to vector<32x128xf32>
    %c0_7 = arith.constant 0 : index
    %c0_8 = arith.constant 0 : index
    %c0_9 = arith.constant 0 : index
    %11 = vector.load %arg4[%c0_7, %c0_8, %c0_9] : memref<4x8x8xf32, #tpu.memory_space<vmem>>, vector<1x8x8xf32>
    %12 = vector.shape_cast %11 : vector<1x8x8xf32> to vector<8x8xf32>
    %13 = vector.extract_strided_slice %9 {offsets = [0, 0], sizes = [8, 128], strides = [1, 1]} : vector<32x128xf32> to vector<8x128xf32>
    %cst_10 = arith.constant dense<0.000000e+00> : vector<8x128xf32>
    %14 = tpu.matmul %12, %13, %cst_10 {dimension_numbers = #tpu.dot_dimension_numbers<[1], [0], [0], [1], [0, 0, 1, 1], [], []>} : vector<8x8xf32>, vector<8x128xf32>, vector<8x128xf32> -> vector<8x128xf32>
    %c0_11 = arith.constant 0 : index
    %c0_12 = arith.constant 0 : index
    %c0_13 = arith.constant 0 : index
    %15 = vector.load %arg10[%c0_11, %c0_12, %c0_13] : memref<4x8x1xf32, #tpu.memory_space<vmem>>, vector<1x8x1xf32>
    %16 = vector.shape_cast %15 : vector<1x8x1xf32> to vector<8x1xf32>
    %cst_14 = arith.constant dense<0xFF800000> : vector<8xf32>
    %17 = vector.multi_reduction <maximumf>, %14, %cst_14 [1] : vector<8x128xf32> to vector<8xf32>
    %18 = vector.shape_cast %17 : vector<8xf32> to vector<8x1xf32>
    %19 = arith.maximumf %16, %18 : vector<8x1xf32>
    %20 = arith.subf %16, %19 : vector<8x1xf32>
    %21 = math.exp %20 : vector<8x1xf32>
    %22 = vector.broadcast %19 : vector<8x1xf32> to vector<8x128xf32>
    %23 = arith.subf %14, %22 : vector<8x128xf32>
    %24 = math.exp %23 : vector<8x128xf32>
    %c0_15 = arith.constant 0 : index
    %c0_16 = arith.constant 0 : index
    %c0_17 = arith.constant 0 : index
    %25 = vector.load %arg11[%c0_15, %c0_16, %c0_17] : memref<4x8x1xf32, #tpu.memory_space<vmem>>, vector<1x8x1xf32>
    %26 = vector.shape_cast %25 : vector<1x8x1xf32> to vector<8x1xf32>
    %27 = arith.mulf %21, %26 : vector<8x1xf32>
    %cst_18 = arith.constant dense<0.000000e+00> : vector<8xf32>
    %28 = vector.multi_reduction <add>, %24, %cst_18 [1] : vector<8x128xf32> to vector<8xf32>
    %29 = vector.shape_cast %28 : vector<8xf32> to vector<8x1xf32>
    %30 = arith.addf %27, %29 : vector<8x1xf32>
    %c0_19 = arith.constant 0 : index
    %c0_20 = arith.constant 0 : index
    %c0_21 = arith.constant 0 : index
    %31 = vector.load %arg11[%c0_19, %c0_20, %c0_21] : memref<4x8x1xf32, #tpu.memory_space<vmem>>, vector<1x8x1xf32>
    %32 = vector.shape_cast %31 : vector<1x8x1xf32> to vector<8x1xf32>
    %33 = vector.shape_cast %30 : vector<8x1xf32> to vector<1x8x1xf32>
    tpu.vector_store %arg11[%c0_19, %c0_20, %c0_21], %33 {strides = array<i32>} : memref<4x8x1xf32, #tpu.memory_space<vmem>>, vector<1x8x1xf32>,
    %34 = vector.extract_strided_slice %10 {offsets = [0, 0], sizes = [8, 128], strides = [1, 1]} : vector<32x128xf32> to vector<8x128xf32>
    %cst_22 = arith.constant dense<0.000000e+00> : vector<8x8xf32>
    %35 = tpu.matmul %24, %34, %cst_22 {dimension_numbers = #tpu.dot_dimension_numbers<[1], [1], [0], [0], [0, 0, 1, 0], [], []>} : vector<8x128xf32>, vector<8x128xf32>, vector<8x8xf32> -> vector<8x8xf32>
    %c0_23 = arith.constant 0 : index
    %c0_24 = arith.constant 0 : index
    %c0_25 = arith.constant 0 : index
    %36 = vector.load %arg12[%c0_23, %c0_24, %c0_25] : memref<4x8x8xf32, #tpu.memory_space<vmem>>, vector<1x8x8xf32>
    %37 = vector.shape_cast %36 : vector<1x8x8xf32> to vector<8x8xf32>
    %38 = vector.broadcast %21 : vector<8x1xf32> to vector<8x8xf32>
    %39 = arith.mulf %38, %37 : vector<8x8xf32>
    %40 = arith.addf %39, %35 : vector<8x8xf32>
    %c0_26 = arith.constant 0 : index
    %c0_27 = arith.constant 0 : index
    %c0_28 = arith.constant 0 : index
    %41 = vector.load %arg12[%c0_26, %c0_27, %c0_28] : memref<4x8x8xf32, #tpu.memory_space<vmem>>, vector<1x8x8xf32>
    %42 = vector.shape_cast %41 : vector<1x8x8xf32> to vector<8x8xf32>
    %43 = vector.shape_cast %40 : vector<8x8xf32> to vector<1x8x8xf32>
    tpu.vector_store %arg12[%c0_26, %c0_27, %c0_28], %43 {strides = array<i32>} : memref<4x8x8xf32, #tpu.memory_space<vmem>>, vector<1x8x8xf32>,
    %c0_29 = arith.constant 0 : index
    %c0_30 = arith.constant 0 : index
    %c0_31 = arith.constant 0 : index
    %44 = vector.load %arg10[%c0_29, %c0_30, %c0_31] : memref<4x8x1xf32, #tpu.memory_space<vmem>>, vector<1x8x1xf32>
    %45 = vector.shape_cast %44 : vector<1x8x1xf32> to vector<8x1xf32>
    %46 = vector.shape_cast %19 : vector<8x1xf32> to vector<1x8x1xf32>
    tpu.vector_store %arg10[%c0_29, %c0_30, %c0_31], %46 {strides = array<i32>} : memref<4x8x1xf32, #tpu.memory_space<vmem>>, vector<1x8x1xf32>,
    %c1 = arith.constant 1 : index
    %c0_32 = arith.constant 0 : index
    %c0_33 = arith.constant 0 : index
    %47 = vector.load %arg4[%c1, %c0_32, %c0_33] : memref<4x8x8xf32, #tpu.memory_space<vmem>>, vector<1x8x8xf32>
    %48 = vector.shape_cast %47 : vector<1x8x8xf32> to vector<8x8xf32>
    %49 = vector.extract_strided_slice %9 {offsets = [8, 0], sizes = [8, 128], strides = [1, 1]} : vector<32x128xf32> to vector<8x128xf32>
    %cst_34 = arith.constant dense<0.000000e+00> : vector<8x128xf32>
    %50 = tpu.matmul %48, %49, %cst_34 {dimension_numbers = #tpu.dot_dimension_numbers<[1], [0], [0], [1], [0, 0, 1, 1], [], []>} : vector<8x8xf32>, vector<8x128xf32>, vector<8x128xf32> -> vector<8x128xf32>
    %c1_35 = arith.constant 1 : index
    %c0_36 = arith.constant 0 : index
    %c0_37 = arith.constant 0 : index
    %51 = vector.load %arg10[%c1_35, %c0_36, %c0_37] : memref<4x8x1xf32, #tpu.memory_space<vmem>>, vector<1x8x1xf32>
    %52 = vector.shape_cast %51 : vector<1x8x1xf32> to vector<8x1xf32>
    %cst_38 = arith.constant dense<0xFF800000> : vector<8xf32>
    %53 = vector.multi_reduction <maximumf>, %50, %cst_38 [1] : vector<8x128xf32> to vector<8xf32>
    %54 = vector.shape_cast %53 : vector<8xf32> to vector<8x1xf32>
    %55 = arith.maximumf %52, %54 : vector<8x1xf32>
    %56 = arith.subf %52, %55 : vector<8x1xf32>
    %57 = math.exp %56 : vector<8x1xf32>
    %58 = vector.broadcast %55 : vector<8x1xf32> to vector<8x128xf32>
    %59 = arith.subf %50, %58 : vector<8x128xf32>
    %60 = math.exp %59 : vector<8x128xf32>
    %c1_39 = arith.constant 1 : index
    %c0_40 = arith.constant 0 : index
    %c0_41 = arith.constant 0 : index
    %61 = vector.load %arg11[%c1_39, %c0_40, %c0_41] : memref<4x8x1xf32, #tpu.memory_space<vmem>>, vector<1x8x1xf32>
    %62 = vector.shape_cast %61 : vector<1x8x1xf32> to vector<8x1xf32>
    %63 = arith.mulf %57, %62 : vector<8x1xf32>
    %cst_42 = arith.constant dense<0.000000e+00> : vector<8xf32>
    %64 = vector.multi_reduction <add>, %60, %cst_42 [1] : vector<8x128xf32> to vector<8xf32>
    %65 = vector.shape_cast %64 : vector<8xf32> to vector<8x1xf32>
    %66 = arith.addf %63, %65 : vector<8x1xf32>
    %c1_43 = arith.constant 1 : index
    %c0_44 = arith.constant 0 : index
    %c0_45 = arith.constant 0 : index
    %67 = vector.load %arg11[%c1_43, %c0_44, %c0_45] : memref<4x8x1xf32, #tpu.memory_space<vmem>>, vector<1x8x1xf32>
    %68 = vector.shape_cast %67 : vector<1x8x1xf32> to vector<8x1xf32>
    %69 = vector.shape_cast %66 : vector<8x1xf32> to vector<1x8x1xf32>
    tpu.vector_store %arg11[%c1_43, %c0_44, %c0_45], %69 {strides = array<i32>} : memref<4x8x1xf32, #tpu.memory_space<vmem>>, vector<1x8x1xf32>,
    %70 = vector.extract_strided_slice %10 {offsets = [8, 0], sizes = [8, 128], strides = [1, 1]} : vector<32x128xf32> to vector<8x128xf32>
    %cst_46 = arith.constant dense<0.000000e+00> : vector<8x8xf32>
    %71 = tpu.matmul %60, %70, %cst_46 {dimension_numbers = #tpu.dot_dimension_numbers<[1], [1], [0], [0], [0, 0, 1, 0], [], []>} : vector<8x128xf32>, vector<8x128xf32>, vector<8x8xf32> -> vector<8x8xf32>
    %c1_47 = arith.constant 1 : index
    %c0_48 = arith.constant 0 : index
    %c0_49 = arith.constant 0 : index
    %72 = vector.load %arg12[%c1_47, %c0_48, %c0_49] : memref<4x8x8xf32, #tpu.memory_space<vmem>>, vector<1x8x8xf32>
    %73 = vector.shape_cast %72 : vector<1x8x8xf32> to vector<8x8xf32>
    %74 = vector.broadcast %57 : vector<8x1xf32> to vector<8x8xf32>
    %75 = arith.mulf %74, %73 : vector<8x8xf32>
    %76 = arith.addf %75, %71 : vector<8x8xf32>
    %c1_50 = arith.constant 1 : index
    %c0_51 = arith.constant 0 : index
    %c0_52 = arith.constant 0 : index
    %77 = vector.load %arg12[%c1_50, %c0_51, %c0_52] : memref<4x8x8xf32, #tpu.memory_space<vmem>>, vector<1x8x8xf32>
    %78 = vector.shape_cast %77 : vector<1x8x8xf32> to vector<8x8xf32>
    %79 = vector.shape_cast %76 : vector<8x8xf32> to vector<1x8x8xf32>
    tpu.vector_store %arg12[%c1_50, %c0_51, %c0_52], %79 {strides = array<i32>} : memref<4x8x8xf32, #tpu.memory_space<vmem>>, vector<1x8x8xf32>,
    %c1_53 = arith.constant 1 : index
    %c0_54 = arith.constant 0 : index
    %c0_55 = arith.constant 0 : index
    %80 = vector.load %arg10[%c1_53, %c0_54, %c0_55] : memref<4x8x1xf32, #tpu.memory_space<vmem>>, vector<1x8x1xf32>
    %81 = vector.shape_cast %80 : vector<1x8x1xf32> to vector<8x1xf32>
    %82 = vector.shape_cast %55 : vector<8x1xf32> to vector<1x8x1xf32>
    tpu.vector_store %arg10[%c1_53, %c0_54, %c0_55], %82 {strides = array<i32>} : memref<4x8x1xf32, #tpu.memory_space<vmem>>, vector<1x8x1xf32>,
    %c2 = arith.constant 2 : index
    %c0_56 = arith.constant 0 : index
    %c0_57 = arith.constant 0 : index
    %83 = vector.load %arg4[%c2, %c0_56, %c0_57] : memref<4x8x8xf32, #tpu.memory_space<vmem>>, vector<1x8x8xf32>
    %84 = vector.shape_cast %83 : vector<1x8x8xf32> to vector<8x8xf32>
    %85 = vector.extract_strided_slice %9 {offsets = [16, 0], sizes = [8, 128], strides = [1, 1]} : vector<32x128xf32> to vector<8x128xf32>
    %cst_58 = arith.constant dense<0.000000e+00> : vector<8x128xf32>
    %86 = tpu.matmul %84, %85, %cst_58 {dimension_numbers = #tpu.dot_dimension_numbers<[1], [0], [0], [1], [0, 0, 1, 1], [], []>} : vector<8x8xf32>, vector<8x128xf32>, vector<8x128xf32> -> vector<8x128xf32>
    %c2_59 = arith.constant 2 : index
    %c0_60 = arith.constant 0 : index
    %c0_61 = arith.constant 0 : index
    %87 = vector.load %arg10[%c2_59, %c0_60, %c0_61] : memref<4x8x1xf32, #tpu.memory_space<vmem>>, vector<1x8x1xf32>
    %88 = vector.shape_cast %87 : vector<1x8x1xf32> to vector<8x1xf32>
    %cst_62 = arith.constant dense<0xFF800000> : vector<8xf32>
    %89 = vector.multi_reduction <maximumf>, %86, %cst_62 [1] : vector<8x128xf32> to vector<8xf32>
    %90 = vector.shape_cast %89 : vector<8xf32> to vector<8x1xf32>
    %91 = arith.maximumf %88, %90 : vector<8x1xf32>
    %92 = arith.subf %88, %91 : vector<8x1xf32>
    %93 = math.exp %92 : vector<8x1xf32>
    %94 = vector.broadcast %91 : vector<8x1xf32> to vector<8x128xf32>
    %95 = arith.subf %86, %94 : vector<8x128xf32>
    %96 = math.exp %95 : vector<8x128xf32>
    %c2_63 = arith.constant 2 : index
    %c0_64 = arith.constant 0 : index
    %c0_65 = arith.constant 0 : index
    %97 = vector.load %arg11[%c2_63, %c0_64, %c0_65] : memref<4x8x1xf32, #tpu.memory_space<vmem>>, vector<1x8x1xf32>
    %98 = vector.shape_cast %97 : vector<1x8x1xf32> to vector<8x1xf32>
    %99 = arith.mulf %93, %98 : vector<8x1xf32>
    %cst_66 = arith.constant dense<0.000000e+00> : vector<8xf32>
    %100 = vector.multi_reduction <add>, %96, %cst_66 [1] : vector<8x128xf32> to vector<8xf32>
    %101 = vector.shape_cast %100 : vector<8xf32> to vector<8x1xf32>
    %102 = arith.addf %99, %101 : vector<8x1xf32>
    %c2_67 = arith.constant 2 : index
    %c0_68 = arith.constant 0 : index
    %c0_69 = arith.constant 0 : index
    %103 = vector.load %arg11[%c2_67, %c0_68, %c0_69] : memref<4x8x1xf32, #tpu.memory_space<vmem>>, vector<1x8x1xf32>
    %104 = vector.shape_cast %103 : vector<1x8x1xf32> to vector<8x1xf32>
    %105 = vector.shape_cast %102 : vector<8x1xf32> to vector<1x8x1xf32>
    tpu.vector_store %arg11[%c2_67, %c0_68, %c0_69], %105 {strides = array<i32>} : memref<4x8x1xf32, #tpu.memory_space<vmem>>, vector<1x8x1xf32>,
    %106 = vector.extract_strided_slice %10 {offsets = [16, 0], sizes = [8, 128], strides = [1, 1]} : vector<32x128xf32> to vector<8x128xf32>
    %cst_70 = arith.constant dense<0.000000e+00> : vector<8x8xf32>
    %107 = tpu.matmul %96, %106, %cst_70 {dimension_numbers = #tpu.dot_dimension_numbers<[1], [1], [0], [0], [0, 0, 1, 0], [], []>} : vector<8x128xf32>, vector<8x128xf32>, vector<8x8xf32> -> vector<8x8xf32>
    %c2_71 = arith.constant 2 : index
    %c0_72 = arith.constant 0 : index
    %c0_73 = arith.constant 0 : index
    %108 = vector.load %arg12[%c2_71, %c0_72, %c0_73] : memref<4x8x8xf32, #tpu.memory_space<vmem>>, vector<1x8x8xf32>
    %109 = vector.shape_cast %108 : vector<1x8x8xf32> to vector<8x8xf32>
    %110 = vector.broadcast %93 : vector<8x1xf32> to vector<8x8xf32>
    %111 = arith.mulf %110, %109 : vector<8x8xf32>
    %112 = arith.addf %111, %107 : vector<8x8xf32>
    %c2_74 = arith.constant 2 : index
    %c0_75 = arith.constant 0 : index
    %c0_76 = arith.constant 0 : index
    %113 = vector.load %arg12[%c2_74, %c0_75, %c0_76] : memref<4x8x8xf32, #tpu.memory_space<vmem>>, vector<1x8x8xf32>
    %114 = vector.shape_cast %113 : vector<1x8x8xf32> to vector<8x8xf32>
    %115 = vector.shape_cast %112 : vector<8x8xf32> to vector<1x8x8xf32>
    tpu.vector_store %arg12[%c2_74, %c0_75, %c0_76], %115 {strides = array<i32>} : memref<4x8x8xf32, #tpu.memory_space<vmem>>, vector<1x8x8xf32>,
    %c2_77 = arith.constant 2 : index
    %c0_78 = arith.constant 0 : index
    %c0_79 = arith.constant 0 : index
    %116 = vector.load %arg10[%c2_77, %c0_78, %c0_79] : memref<4x8x1xf32, #tpu.memory_space<vmem>>, vector<1x8x1xf32>
    %117 = vector.shape_cast %116 : vector<1x8x1xf32> to vector<8x1xf32>
    %118 = vector.shape_cast %91 : vector<8x1xf32> to vector<1x8x1xf32>
    tpu.vector_store %arg10[%c2_77, %c0_78, %c0_79], %118 {strides = array<i32>} : memref<4x8x1xf32, #tpu.memory_space<vmem>>, vector<1x8x1xf32>,
    %c3 = arith.constant 3 : index
    %c0_80 = arith.constant 0 : index
    %c0_81 = arith.constant 0 : index
    %119 = vector.load %arg4[%c3, %c0_80, %c0_81] : memref<4x8x8xf32, #tpu.memory_space<vmem>>, vector<1x8x8xf32>
    %120 = vector.shape_cast %119 : vector<1x8x8xf32> to vector<8x8xf32>
    %121 = vector.extract_strided_slice %9 {offsets = [24, 0], sizes = [8, 128], strides = [1, 1]} : vector<32x128xf32> to vector<8x128xf32>
    %cst_82 = arith.constant dense<0.000000e+00> : vector<8x128xf32>
    %122 = tpu.matmul %120, %121, %cst_82 {dimension_numbers = #tpu.dot_dimension_numbers<[1], [0], [0], [1], [0, 0, 1, 1], [], []>} : vector<8x8xf32>, vector<8x128xf32>, vector<8x128xf32> -> vector<8x128xf32>
    %c3_83 = arith.constant 3 : index
    %c0_84 = arith.constant 0 : index
    %c0_85 = arith.constant 0 : index
    %123 = vector.load %arg10[%c3_83, %c0_84, %c0_85] : memref<4x8x1xf32, #tpu.memory_space<vmem>>, vector<1x8x1xf32>
    %124 = vector.shape_cast %123 : vector<1x8x1xf32> to vector<8x1xf32>
    %cst_86 = arith.constant dense<0xFF800000> : vector<8xf32>
    %125 = vector.multi_reduction <maximumf>, %122, %cst_86 [1] : vector<8x128xf32> to vector<8xf32>
    %126 = vector.shape_cast %125 : vector<8xf32> to vector<8x1xf32>
    %127 = arith.maximumf %124, %126 : vector<8x1xf32>
    %128 = arith.subf %124, %127 : vector<8x1xf32>
    %129 = math.exp %128 : vector<8x1xf32>
    %130 = vector.broadcast %127 : vector<8x1xf32> to vector<8x128xf32>
    %131 = arith.subf %122, %130 : vector<8x128xf32>
    %132 = math.exp %131 : vector<8x128xf32>
    %c3_87 = arith.constant 3 : index
    %c0_88 = arith.constant 0 : index
    %c0_89 = arith.constant 0 : index
    %133 = vector.load %arg11[%c3_87, %c0_88, %c0_89] : memref<4x8x1xf32, #tpu.memory_space<vmem>>, vector<1x8x1xf32>
    %134 = vector.shape_cast %133 : vector<1x8x1xf32> to vector<8x1xf32>
    %135 = arith.mulf %129, %134 : vector<8x1xf32>
    %cst_90 = arith.constant dense<0.000000e+00> : vector<8xf32>
    %136 = vector.multi_reduction <add>, %132, %cst_90 [1] : vector<8x128xf32> to vector<8xf32>
    %137 = vector.shape_cast %136 : vector<8xf32> to vector<8x1xf32>
    %138 = arith.addf %135, %137 : vector<8x1xf32>
    %c3_91 = arith.constant 3 : index
    %c0_92 = arith.constant 0 : index
    %c0_93 = arith.constant 0 : index
    %139 = vector.load %arg11[%c3_91, %c0_92, %c0_93] : memref<4x8x1xf32, #tpu.memory_space<vmem>>, vector<1x8x1xf32>
    %140 = vector.shape_cast %139 : vector<1x8x1xf32> to vector<8x1xf32>
    %141 = vector.shape_cast %138 : vector<8x1xf32> to vector<1x8x1xf32>
    tpu.vector_store %arg11[%c3_91, %c0_92, %c0_93], %141 {strides = array<i32>} : memref<4x8x1xf32, #tpu.memory_space<vmem>>, vector<1x8x1xf32>,
    %142 = vector.extract_strided_slice %10 {offsets = [24, 0], sizes = [8, 128], strides = [1, 1]} : vector<32x128xf32> to vector<8x128xf32>
    %cst_94 = arith.constant dense<0.000000e+00> : vector<8x8xf32>
    %143 = tpu.matmul %132, %142, %cst_94 {dimension_numbers = #tpu.dot_dimension_numbers<[1], [1], [0], [0], [0, 0, 1, 0], [], []>} : vector<8x128xf32>, vector<8x128xf32>, vector<8x8xf32> -> vector<8x8xf32>
    %c3_95 = arith.constant 3 : index
    %c0_96 = arith.constant 0 : index
    %c0_97 = arith.constant 0 : index
    %144 = vector.load %arg12[%c3_95, %c0_96, %c0_97] : memref<4x8x8xf32, #tpu.memory_space<vmem>>, vector<1x8x8xf32>
    %145 = vector.shape_cast %144 : vector<1x8x8xf32> to vector<8x8xf32>
    %146 = vector.broadcast %129 : vector<8x1xf32> to vector<8x8xf32>
    %147 = arith.mulf %146, %145 : vector<8x8xf32>
    %148 = arith.addf %147, %143 : vector<8x8xf32>
    %c3_98 = arith.constant 3 : index
    %c0_99 = arith.constant 0 : index
    %c0_100 = arith.constant 0 : index
    %149 = vector.load %arg12[%c3_98, %c0_99, %c0_100] : memref<4x8x8xf32, #tpu.memory_space<vmem>>, vector<1x8x8xf32>
    %150 = vector.shape_cast %149 : vector<1x8x8xf32> to vector<8x8xf32>
    %151 = vector.shape_cast %148 : vector<8x8xf32> to vector<1x8x8xf32>
    tpu.vector_store %arg12[%c3_98, %c0_99, %c0_100], %151 {strides = array<i32>} : memref<4x8x8xf32, #tpu.memory_space<vmem>>, vector<1x8x8xf32>,
    %c3_101 = arith.constant 3 : index
    %c0_102 = arith.constant 0 : index
    %c0_103 = arith.constant 0 : index
    %152 = vector.load %arg10[%c3_101, %c0_102, %c0_103] : memref<4x8x1xf32, #tpu.memory_space<vmem>>, vector<1x8x1xf32>
    %153 = vector.shape_cast %152 : vector<1x8x1xf32> to vector<8x1xf32>
    %154 = vector.shape_cast %127 : vector<8x1xf32> to vector<1x8x1xf32>
    tpu.vector_store %arg10[%c3_101, %c0_102, %c0_103], %154 {strides = array<i32>} : memref<4x8x1xf32, #tpu.memory_space<vmem>>, vector<1x8x1xf32>,
    %c1_i32 = arith.constant 1 : i32
    %155 = arith.cmpi eq, %arg1, %c1_i32 : i32
    %156 = arith.extui %155 : i1 to i32
    %c0_i32_104 = arith.constant 0 : i32
    %157 = arith.cmpi ne, %156, %c0_i32_104 : i32
    scf.if %157 {
      %c0_105 = arith.constant 0 : index
      %c0_106 = arith.constant 0 : index
      %158 = vector.load %arg5[%c0_105, %c0_106] : memref<8x32xf32, #tpu.memory_space<vmem>>, vector<8x32xf32>
      %c0_107 = arith.constant 0 : index
      %c0_108 = arith.constant 0 : index
      %159 = vector.load %arg8[%c0_107, %c0_108] : memref<8x32xf32, #tpu.memory_space<vmem>>, vector<1x32xf32>
      %c0_109 = arith.constant 0 : index
      %c0_110 = arith.constant 0 : index
      %c0_111 = arith.constant 0 : index
      %160 = vector.load %arg11[%c0_109, %c0_110, %c0_111] : memref<4x8x1xf32, #tpu.memory_space<vmem>>, vector<1x8x1xf32>
      %161 = vector.shape_cast %160 : vector<1x8x1xf32> to vector<8x1xf32>
      %162 = tpu.reciprocal %161 {approx = true} : vector<8x1xf32> -> vector<8x1xf32>
      %c0_112 = arith.constant 0 : index
      %c0_113 = arith.constant 0 : index
      %c0_114 = arith.constant 0 : index
      %163 = vector.load %arg12[%c0_112, %c0_113, %c0_114] : memref<4x8x8xf32, #tpu.memory_space<vmem>>, vector<1x8x8xf32>
      %164 = vector.shape_cast %163 : vector<1x8x8xf32> to vector<8x8xf32>
      %165 = vector.broadcast %162 : vector<8x1xf32> to vector<8x8xf32>
      %166 = arith.mulf %164, %165 : vector<8x8xf32>
      %c0_115 = arith.constant 0 : index
      %c0_116 = arith.constant 0 : index
      %c0_117 = arith.constant 0 : index
      %167 = vector.load %arg7[%c0_115, %c0_116, %c0_117] : memref<4x8x32xf32, #tpu.memory_space<vmem>>, vector<1x8x32xf32>
      %168 = vector.shape_cast %167 : vector<1x8x32xf32> to vector<8x32xf32>
      %cst_118 = arith.constant dense<0.000000e+00> : vector<8x32xf32>
      %169 = tpu.matmul %166, %168, %cst_118 {dimension_numbers = #tpu.dot_dimension_numbers<[1], [0], [0], [1], [0, 0, 1, 1], [], []>} : vector<8x8xf32>, vector<8x32xf32>, vector<8x32xf32> -> vector<8x32xf32>
      %170 = vector.broadcast %159 : vector<1x32xf32> to vector<8x32xf32>
      %171 = arith.addf %170, %169 : vector<8x32xf32>
      %c1_119 = arith.constant 1 : index
      %c0_120 = arith.constant 0 : index
      %c0_121 = arith.constant 0 : index
      %172 = vector.load %arg11[%c1_119, %c0_120, %c0_121] : memref<4x8x1xf32, #tpu.memory_space<vmem>>, vector<1x8x1xf32>
      %173 = vector.shape_cast %172 : vector<1x8x1xf32> to vector<8x1xf32>
      %174 = tpu.reciprocal %173 {approx = true} : vector<8x1xf32> -> vector<8x1xf32>
      %c1_122 = arith.constant 1 : index
      %c0_123 = arith.constant 0 : index
      %c0_124 = arith.constant 0 : index
      %175 = vector.load %arg12[%c1_122, %c0_123, %c0_124] : memref<4x8x8xf32, #tpu.memory_space<vmem>>, vector<1x8x8xf32>
      %176 = vector.shape_cast %175 : vector<1x8x8xf32> to vector<8x8xf32>
      %177 = vector.broadcast %174 : vector<8x1xf32> to vector<8x8xf32>
      %178 = arith.mulf %176, %177 : vector<8x8xf32>
      %c1_125 = arith.constant 1 : index
      %c0_126 = arith.constant 0 : index
      %c0_127 = arith.constant 0 : index
      %179 = vector.load %arg7[%c1_125, %c0_126, %c0_127] : memref<4x8x32xf32, #tpu.memory_space<vmem>>, vector<1x8x32xf32>
      %180 = vector.shape_cast %179 : vector<1x8x32xf32> to vector<8x32xf32>
      %cst_128 = arith.constant dense<0.000000e+00> : vector<8x32xf32>
      %181 = tpu.matmul %178, %180, %cst_128 {dimension_numbers = #tpu.dot_dimension_numbers<[1], [0], [0], [1], [0, 0, 1, 1], [], []>} : vector<8x8xf32>, vector<8x32xf32>, vector<8x32xf32> -> vector<8x32xf32>
      %182 = arith.addf %171, %181 : vector<8x32xf32>
      %c2_129 = arith.constant 2 : index
      %c0_130 = arith.constant 0 : index
      %c0_131 = arith.constant 0 : index
      %183 = vector.load %arg11[%c2_129, %c0_130, %c0_131] : memref<4x8x1xf32, #tpu.memory_space<vmem>>, vector<1x8x1xf32>
      %184 = vector.shape_cast %183 : vector<1x8x1xf32> to vector<8x1xf32>
      %185 = tpu.reciprocal %184 {approx = true} : vector<8x1xf32> -> vector<8x1xf32>
      %c2_132 = arith.constant 2 : index
      %c0_133 = arith.constant 0 : index
      %c0_134 = arith.constant 0 : index
      %186 = vector.load %arg12[%c2_132, %c0_133, %c0_134] : memref<4x8x8xf32, #tpu.memory_space<vmem>>, vector<1x8x8xf32>
      %187 = vector.shape_cast %186 : vector<1x8x8xf32> to vector<8x8xf32>
      %188 = vector.broadcast %185 : vector<8x1xf32> to vector<8x8xf32>
      %189 = arith.mulf %187, %188 : vector<8x8xf32>
      %c2_135 = arith.constant 2 : index
      %c0_136 = arith.constant 0 : index
      %c0_137 = arith.constant 0 : index
      %190 = vector.load %arg7[%c2_135, %c0_136, %c0_137] : memref<4x8x32xf32, #tpu.memory_space<vmem>>, vector<1x8x32xf32>
      %191 = vector.shape_cast %190 : vector<1x8x32xf32> to vector<8x32xf32>
      %cst_138 = arith.constant dense<0.000000e+00> : vector<8x32xf32>
      %192 = tpu.matmul %189, %191, %cst_138 {dimension_numbers = #tpu.dot_dimension_numbers<[1], [0], [0], [1], [0, 0, 1, 1], [], []>} : vector<8x8xf32>, vector<8x32xf32>, vector<8x32xf32> -> vector<8x32xf32>
      %193 = arith.addf %182, %192 : vector<8x32xf32>
      %c3_139 = arith.constant 3 : index
      %c0_140 = arith.constant 0 : index
      %c0_141 = arith.constant 0 : index
      %194 = vector.load %arg11[%c3_139, %c0_140, %c0_141] : memref<4x8x1xf32, #tpu.memory_space<vmem>>, vector<1x8x1xf32>
      %195 = vector.shape_cast %194 : vector<1x8x1xf32> to vector<8x1xf32>
      %196 = tpu.reciprocal %195 {approx = true} : vector<8x1xf32> -> vector<8x1xf32>
      %c3_142 = arith.constant 3 : index
      %c0_143 = arith.constant 0 : index
      %c0_144 = arith.constant 0 : index
      %197 = vector.load %arg12[%c3_142, %c0_143, %c0_144] : memref<4x8x8xf32, #tpu.memory_space<vmem>>, vector<1x8x8xf32>
      %198 = vector.shape_cast %197 : vector<1x8x8xf32> to vector<8x8xf32>
      %199 = vector.broadcast %196 : vector<8x1xf32> to vector<8x8xf32>
      %200 = arith.mulf %198, %199 : vector<8x8xf32>
      %c3_145 = arith.constant 3 : index
      %c0_146 = arith.constant 0 : index
      %c0_147 = arith.constant 0 : index
      %201 = vector.load %arg7[%c3_145, %c0_146, %c0_147] : memref<4x8x32xf32, #tpu.memory_space<vmem>>, vector<1x8x32xf32>
      %202 = vector.shape_cast %201 : vector<1x8x32xf32> to vector<8x32xf32>
      %cst_148 = arith.constant dense<0.000000e+00> : vector<8x32xf32>
      %203 = tpu.matmul %200, %202, %cst_148 {dimension_numbers = #tpu.dot_dimension_numbers<[1], [0], [0], [1], [0, 0, 1, 1], [], []>} : vector<8x8xf32>, vector<8x32xf32>, vector<8x32xf32> -> vector<8x32xf32>
      %204 = arith.addf %193, %203 : vector<8x32xf32>
      %205 = arith.addf %158, %204 : vector<8x32xf32>
      %cst_149 = arith.constant dense<0.000000e+00> : vector<8xf32>
      %206 = vector.multi_reduction <add>, %205, %cst_149 [1] : vector<8x32xf32> to vector<8xf32>
      %207 = vector.shape_cast %206 : vector<8xf32> to vector<8x1xf32>
      %cst_150 = arith.constant 3.200000e+01 : f32
      %208 = vector.broadcast %cst_150 : f32 to vector<8x1xf32>
      %209 = arith.divf %207, %208 : vector<8x1xf32>
      %210 = vector.broadcast %209 : vector<8x1xf32> to vector<8x32xf32>
      %211 = arith.subf %205, %210 : vector<8x32xf32>
      %212 = arith.mulf %211, %211 : vector<8x32xf32>
      %cst_151 = arith.constant dense<0.000000e+00> : vector<8xf32>
      %213 = vector.multi_reduction <add>, %212, %cst_151 [1] : vector<8x32xf32> to vector<8xf32>
      %214 = vector.shape_cast %213 : vector<8xf32> to vector<8x1xf32>
      %cst_152 = arith.constant 3.200000e+01 : f32
      %215 = vector.broadcast %cst_152 : f32 to vector<8x1xf32>
      %216 = arith.divf %214, %215 : vector<8x1xf32>
      %217 = vector.broadcast %209 : vector<8x1xf32> to vector<8x32xf32>
      %218 = arith.subf %205, %217 : vector<8x32xf32>
      %cst_153 = arith.constant 9.99999974E-6 : f32
      %219 = vector.broadcast %cst_153 : f32 to vector<8x1xf32>
      %220 = arith.addf %216, %219 : vector<8x1xf32>
      %221 = math.rsqrt %220 : vector<8x1xf32>
      %222 = vector.broadcast %221 : vector<8x1xf32> to vector<8x32xf32>
      %223 = arith.mulf %218, %222 : vector<8x32xf32>
      %c1_154 = arith.constant 1 : index
      %c0_155 = arith.constant 0 : index
      %224 = vector.load %arg8[%c1_154, %c0_155] : memref<8x32xf32, #tpu.memory_space<vmem>>, vector<1x32xf32>
      %225 = vector.broadcast %224 : vector<1x32xf32> to vector<8x32xf32>
      %226 = arith.mulf %223, %225 : vector<8x32xf32>
      %c2_156 = arith.constant 2 : index
      %c0_157 = arith.constant 0 : index
      %227 = vector.load %arg8[%c2_156, %c0_157] : memref<8x32xf32, #tpu.memory_space<vmem>>, vector<1x32xf32>
      %228 = vector.broadcast %227 : vector<1x32xf32> to vector<8x32xf32>
      %229 = arith.addf %226, %228 : vector<8x32xf32>
      %c0_158 = arith.constant 0 : index
      %c0_159 = arith.constant 0 : index
      %c0_160 = arith.constant 0 : index
      %230 = vector.load %arg9[%c0_158, %c0_159, %c0_160] : memref<1x8x32xf32, #tpu.memory_space<vmem>>, vector<1x8x32xf32>
      %231 = vector.shape_cast %230 : vector<1x8x32xf32> to vector<8x32xf32>
      %232 = vector.shape_cast %229 : vector<8x32xf32> to vector<1x8x32xf32>
      tpu.vector_store %arg9[%c0_158, %c0_159, %c0_160], %232 {strides = array<i32>} : memref<1x8x32xf32, #tpu.memory_space<vmem>>, vector<1x8x32xf32>,
    } else {
    }
    return
  }
  func.func @transform_0(%arg0: i32, %arg1: i32) -> (i32, i32, i32) {
    %c0_i32 = arith.constant 0 : i32
    %c0_i32_0 = arith.constant 0 : i32
    return %arg0, %c0_i32, %arg1 : i32, i32, i32
  }
  func.func @transform_1(%arg0: i32, %arg1: i32) -> (i32, i32) {
    %c0_i32 = arith.constant 0 : i32
    %c0_i32_0 = arith.constant 0 : i32
    return %c0_i32, %arg1 : i32, i32
  }
  func.func @transform_2(%arg0: i32, %arg1: i32) -> (i32, i32, i32) {
    %c0_i32 = arith.constant 0 : i32
    %c0_i32_0 = arith.constant 0 : i32
    %c0_i32_1 = arith.constant 0 : i32
    %c0_i32_2 = arith.constant 0 : i32
    return %c0_i32, %c0_i32_0, %c0_i32_1 : i32, i32, i32
  }
  func.func @transform_3(%arg0: i32, %arg1: i32) -> (i32, i32) {
    %c0_i32 = arith.constant 0 : i32
    %c0_i32_0 = arith.constant 0 : i32
    %c0_i32_1 = arith.constant 0 : i32
    return %c0_i32, %c0_i32_0 : i32, i32
  }
  func.func @transform_4(%arg0: i32, %arg1: i32) -> (i32, i32) {
    %c0_i32 = arith.constant 0 : i32
    %c0_i32_0 = arith.constant 0 : i32
    %c0_i32_1 = arith.constant 0 : i32
    return %c0_i32, %c0_i32_0 : i32, i32
  }
  func.func @transform_5(%arg0: i32, %arg1: i32) -> (i32, i32, i32) {
    %c0_i32 = arith.constant 0 : i32
    %c0_i32_0 = arith.constant 0 : i32
    %c0_i32_1 = arith.constant 0 : i32
    %c0_i32_2 = arith.constant 0 : i32
    return %c0_i32, %c0_i32_0, %c0_i32_1 : i32, i32, i32
  }
  func.func @transform_6(%arg0: i32, %arg1: i32) -> (i32, i32) {
    %c0_i32 = arith.constant 0 : i32
    %c0_i32_0 = arith.constant 0 : i32
    %c0_i32_1 = arith.constant 0 : i32
    return %c0_i32, %c0_i32_0 : i32, i32
  }
  func.func @transform_7(%arg0: i32, %arg1: i32) -> (i32, i32, i32) {
    %c0_i32 = arith.constant 0 : i32
    %c0_i32_0 = arith.constant 0 : i32
    %c0_i32_1 = arith.constant 0 : i32
    return %arg0, %c0_i32, %c0_i32_0 : i32, i32, i32
  }
}

</mosaic_0001>

<llo_original>
// kernel: tpu_custom_call.1
$region0: #{tpu_custom_call.1}
  #allocation0 [shape = 'u32[]', space=smem, size = 0x4, offset = 0x4, fixed_abs, tag = 'smem constant byte address 0x4 - core index']
  #allocation1 [shape = 'u32[144,128]{1,0:T(1,128)}', space=vmem, size = 0x12000, scoped, tag = 'internal scratch']
  #allocation2 [shape = 'f32[4,8,1]{2,1,0:T(8,128)}', space=vmem, size = 0x4000, scoped, tag = 'scratch operand']
  #allocation3 [shape = 'f32[4,8,1]{2,1,0:T(8,128)}', space=vmem, size = 0x4000, scoped, tag = 'scratch operand']
  #allocation4 [shape = 'f32[4,8,8]{2,1,0:T(8,128)}', space=vmem, size = 0x4000, scoped, tag = 'scratch operand']
  %s0 = inlined_call_operand.hbm [shape: f32[2,32,256], index: 0, kind: input, shape index: {}]
  %s1 = inlined_call_operand.vmem [shape: f32[32,256], index: 1, kind: input, shape index: {}]
  %s2 = inlined_call_operand.vmem [shape: f32[4,8,8], index: 2, kind: input, shape index: {}]
  %s3 = inlined_call_operand.hbm [shape: f32[8,32], index: 3, kind: input, shape index: {}]
  %s4 = inlined_call_operand.vmem [shape: f32[64,32], index: 4, kind: input, shape index: {}]
  %s5 = inlined_call_operand.hbm [shape: f32[4,8,32], index: 5, kind: input, shape index: {}]
  %s6 = inlined_call_operand.vmem [shape: f32[8,32], index: 6, kind: input, shape index: {}]
  %s7 = inlined_call_operand.hbm [shape: f32[2,8,32], index: 7, kind: output, shape index: {}]
  %s8 = sld [smem:[#allocation0]]
  $region119: #{tpu_custom_call.1} parent=0
    _
  %s10 = ssub.s32 1, %s8
  %s11 = scalar_select 0, %s10, %s8
  $region1: #{tpu_custom_call.1} parent=0
    #allocation5 [shape = 'u8[32768]{0}', space=vmem, size = 0x8000, scoped, tag = 'input window, operand 0']
    #allocation6 [shape = 's32[2]{0}', space=sflag, size = 0x8, scoped, tag = 'scoped memory for tpu_custom_call.1']
    #allocation7 [shape = 's32[2]{0}', space=sflag, size = 0x8, scoped, tag = 'scoped memory for tpu_custom_call.1']
    #allocation8 [shape = 'u8[32768]{0}', space=vmem, size = 0x8000, scoped, tag = 'input window, operand 1']
    #allocation9 [shape = 'u8[4096]{0}', space=vmem, size = 0x1000, scoped, tag = 'input window, operand 3, single buffered']
    #allocation10 [shape = 's32[1]{0}', space=sflag, size = 0x4, scoped, tag = 'scoped memory for tpu_custom_call.1']
    #allocation11 [shape = 'u8[16384]{0}', space=vmem, size = 0x4000, scoped, tag = 'input window, operand 5, single buffered']
    #allocation12 [shape = 'u8[8192]{0}', space=vmem, size = 0x2000, scoped, tag = 'output window, operand 0']
    %12 = vsyncpa [#allocation6], 0
    %s13 = scalar_lea.sflag [#allocation6], 1
    %14 = vsyncpa %s13, 0
    %15 = vsyncpa [#allocation10], 0
    %16 = vsyncpa [#allocation7], 0
    %s17 = scalar_lea.sflag [#allocation7], 1
    %18 = vsyncpa %s17, 0
    loop: start=0, step=1, limit=6
    $region2: #{tpu_custom_call.1} parent=1 // loop_pre_header
      _
    $region3: #{tpu_custom_call.1} parent=1 // loop_header
      %s20 = sphi 0, %s24
      %p21 = scmp.ge.s32.totalorder %s20, 6
      %s27 = sphi 0, %s39
      %s28 = sphi 0, %s35
      %s29 = sphi 0, %s27
      %s30 = sphi 0, %s28
      %s31 = sphi 0, %s29
      %s32 = sphi 0, %s30
      %s44 = sphi 0, %s46
      %s47 = sphi 0, %s44
      %s48 = sphi 0, %s47
      %s64 = sphi 0, %s48
      %s70 = sphi 0, %s72
      %s73 = sphi 0, %s70
      %s74 = sphi 0, %s73
      %s90 = sphi 0, %s74
      %s94 = sphi 0, %s94
      %s96 = sphi 0, %s94
      %s97 = sphi 0, %s96
      %s111 = sphi 0, %s97
      %s115 = sphi 0, %s115
      %s117 = sphi 0, %s115
      %s118 = sphi 0, %s117
      %s132 = sphi 0, %s118
      %s136 = sphi 0, %s136
      %s138 = sphi 0, %s136
      %s139 = sphi 0, %s138
      %s153 = sphi 0, %s139
      %s157 = sphi 0, %s157
      %s159 = sphi 0, %s157
      %s160 = sphi 0, %s159
      %s174 = sphi 0, %s160
      %s178 = sphi 0, %s178
      %s180 = sphi 0, %s178
      %s181 = sphi 0, %s180
      %s195 = sphi 0, %s181
      %s201 = sphi 0, %s203
      %s204 = sphi 0, %s201
      %s205 = sphi 0, %s204
      %s221 = sphi 0, %s205
    $region4: #{tpu_custom_call.1} parent=1 // loop_header_branch
      %23 = sbr.rel (%p21) target = $region8
    $region5: #{tpu_custom_call.1} parent=1 // loop_body
      %s25 = ssub.s32 %s20, 1
      %s26 = ssub.s32 %s20, 2
      %s33 = sadd.s32 1, %s28
      %p34 = scmp.ge.s32.totalorder %s33, 2
      %s35 = scalar_select %p34, 0, %s33
      %s36 = sadd.s32 1, %s27
      %s37 = scalar_select %p34, %s36, %s27
      %p38 = scmp.ge.s32.totalorder %s37, 2
      %s39 = scalar_select %p38, 0, %s37
      %s40 = ssub.s32 %s27, %s39
      %s41 = ssub.s32 %s28, %s35
      %s42 = sor.u32 %s40, %s41
      %p43 = scmp.eq.s32.totalorder %s42, 0
      %s45 = sadd.s32 %s44, 1
      %s46 = scalar_select %p43, %s44, %s45
      %p49 = pneg %p43
      %p50 = scmp.eq.s32.totalorder %s20, 3
      %p51 = por %p49, %p50
      %p52 = scmp.ne.s32.totalorder %s44, %s47
      %p53 = scmp.eq.s32.totalorder %s20, 0
      %p54 = por %p52, %p53
      %p55 = scmp.ne.s32.totalorder %s44, %s47
      %p56 = scmp.eq.s32.totalorder %s25, 3
      %p57 = por %p55, %p56
      %p58 = scmp.ne.s32.totalorder %s47, %s48
      %p59 = scmp.eq.s32.totalorder %s25, 0
      %p60 = por %p58, %p59
      %p61 = scmp.ne.s32.totalorder %s47, %s48
      %p62 = scmp.eq.s32.totalorder %s26, 3
      %p63 = por %p61, %p62
      %p65 = scmp.ne.s32.totalorder %s48, %s64
      %p66 = scmp.eq.s32.totalorder %s26, 0
      %p67 = por %p65, %p66
      %s68 = ssub.s32 %s28, %s35
      %p69 = scmp.eq.s32.totalorder %s68, 0
      %s71 = sadd.s32 %s70, 1
      %s72 = scalar_select %p69, %s70, %s71
      %p75 = pneg %p69
      %p76 = scmp.eq.s32.totalorder %s20, 3
      %p77 = por %p75, %p76
      %p78 = scmp.ne.s32.totalorder %s70, %s73
      %p79 = scmp.eq.s32.totalorder %s20, 0
      %p80 = por %p78, %p79
      %p81 = scmp.ne.s32.totalorder %s70, %s73
      %p82 = scmp.eq.s32.totalorder %s25, 3
      %p83 = por %p81, %p82
      %p84 = scmp.ne.s32.totalorder %s73, %s74
      %p85 = scmp.eq.s32.totalorder %s25, 0
      %p86 = por %p84, %p85
      %p87 = scmp.ne.s32.totalorder %s73, %s74
      %p88 = scmp.eq.s32.totalorder %s26, 3
      %p89 = por %p87, %p88
      %p91 = scmp.ne.s32.totalorder %s74, %s90
      %p92 = scmp.eq.s32.totalorder %s26, 0
      %p93 = por %p91, %p92
      %s95 = sadd.s32 %s94, 1
      %p98 = scmp.eq.s32.totalorder %s20, 3
      %p99 = scmp.ne.s32.totalorder %s94, %s96
      %p100 = scmp.eq.s32.totalorder %s20, 0
      %p101 = por %p99, %p100
      %p102 = scmp.ne.s32.totalorder %s94, %s96
      %p103 = scmp.eq.s32.totalorder %s25, 3
      %p104 = por %p102, %p103
      %p105 = scmp.ne.s32.totalorder %s96, %s97
      %p106 = scmp.eq.s32.totalorder %s25, 0
      %p107 = por %p105, %p106
      %p108 = scmp.ne.s32.totalorder %s96, %s97
      %p109 = scmp.eq.s32.totalorder %s26, 3
      %p110 = por %p108, %p109
      %p112 = scmp.ne.s32.totalorder %s97, %s111
      %p113 = scmp.eq.s32.totalorder %s26, 0
      %p114 = por %p112, %p113
      %s116 = sadd.s32 %s115, 1
      %p119 = scmp.eq.s32.totalorder %s20, 3
      %p120 = scmp.ne.s32.totalorder %s115, %s117
      %p121 = scmp.eq.s32.totalorder %s20, 0
      %p122 = por %p120, %p121
      %p123 = scmp.ne.s32.totalorder %s115, %s117
      %p124 = scmp.eq.s32.totalorder %s25, 3
      %p125 = por %p123, %p124
      %p126 = scmp.ne.s32.totalorder %s117, %s118
      %p127 = scmp.eq.s32.totalorder %s25, 0
      %p128 = por %p126, %p127
      %p129 = scmp.ne.s32.totalorder %s117, %s118
      %p130 = scmp.eq.s32.totalorder %s26, 3
      %p131 = por %p129, %p130
      %p133 = scmp.ne.s32.totalorder %s118, %s132
      %p134 = scmp.eq.s32.totalorder %s26, 0
      %p135 = por %p133, %p134
      %s137 = sadd.s32 %s136, 1
      %p140 = scmp.eq.s32.totalorder %s20, 3
      %p141 = scmp.ne.s32.totalorder %s136, %s138
      %p142 = scmp.eq.s32.totalorder %s20, 0
      %p143 = por %p141, %p142
      %p144 = scmp.ne.s32.totalorder %s136, %s138
      %p145 = scmp.eq.s32.totalorder %s25, 3
      %p146 = por %p144, %p145
      %p147 = scmp.ne.s32.totalorder %s138, %s139
      %p148 = scmp.eq.s32.totalorder %s25, 0
      %p149 = por %p147, %p148
      %p150 = scmp.ne.s32.totalorder %s138, %s139
      %p151 = scmp.eq.s32.totalorder %s26, 3
      %p152 = por %p150, %p151
      %p154 = scmp.ne.s32.totalorder %s139, %s153
      %p155 = scmp.eq.s32.totalorder %s26, 0
      %p156 = por %p154, %p155
      %s158 = sadd.s32 %s157, 1
      %p161 = scmp.eq.s32.totalorder %s20, 3
      %p162 = scmp.ne.s32.totalorder %s157, %s159
      %p163 = scmp.eq.s32.totalorder %s20, 0
      %p164 = por %p162, %p163
      %p165 = scmp.ne.s32.totalorder %s157, %s159
      %p166 = scmp.eq.s32.totalorder %s25, 3
      %p167 = por %p165, %p166
      %p168 = scmp.ne.s32.totalorder %s159, %s160
      %p169 = scmp.eq.s32.totalorder %s25, 0
      %p170 = por %p168, %p169
      %p171 = scmp.ne.s32.totalorder %s159, %s160
      %p172 = scmp.eq.s32.totalorder %s26, 3
      %p173 = por %p171, %p172
      %p175 = scmp.ne.s32.totalorder %s160, %s174
      %p176 = scmp.eq.s32.totalorder %s26, 0
      %p177 = por %p175, %p176
      %s179 = sadd.s32 %s178, 1
      %p182 = scmp.eq.s32.totalorder %s20, 3
      %p183 = scmp.ne.s32.totalorder %s178, %s180
      %p184 = scmp.eq.s32.totalorder %s20, 0
      %p185 = por %p183, %p184
      %p186 = scmp.ne.s32.totalorder %s178, %s180
      %p187 = scmp.eq.s32.totalorder %s25, 3
      %p188 = por %p186, %p187
      %p189 = scmp.ne.s32.totalorder %s180, %s181
      %p190 = scmp.eq.s32.totalorder %s25, 0
      %p191 = por %p189, %p190
      %p192 = scmp.ne.s32.totalorder %s180, %s181
      %p193 = scmp.eq.s32.totalorder %s26, 3
      %p194 = por %p192, %p193
      %p196 = scmp.ne.s32.totalorder %s181, %s195
      %p197 = scmp.eq.s32.totalorder %s26, 0
      %p198 = por %p196, %p197
      %s199 = ssub.s32 %s27, %s39
      %p200 = scmp.eq.s32.totalorder %s199, 0
      %s202 = sadd.s32 %s201, 1
      %s203 = scalar_select %p200, %s201, %s202
      %p206 = pneg %p200
      %p207 = scmp.eq.s32.totalorder %s20, 3
      %p208 = por %p206, %p207
      %p209 = scmp.ne.s32.totalorder %s201, %s204
      %p210 = scmp.eq.s32.totalorder %s20, 0
      %p211 = por %p209, %p210
      %p212 = scmp.ne.s32.totalorder %s201, %s204
      %p213 = scmp.eq.s32.totalorder %s25, 3
      %p214 = por %p212, %p213
      %p215 = scmp.ne.s32.totalorder %s204, %s205
      %p216 = scmp.eq.s32.totalorder %s25, 0
      %p217 = por %p215, %p216
      %p218 = scmp.ne.s32.totalorder %s204, %s205
      %p219 = scmp.eq.s32.totalorder %s26, 3
      %p220 = por %p218, %p219
      %p222 = scmp.ne.s32.totalorder %s205, %s221
      %p223 = scmp.eq.s32.totalorder %s26, 0
      %p224 = por %p222, %p223
      %p225 = scmp.le.s32.totalorder 1, %s20
      %p226 = scmp.lt.s32.totalorder %s20, 5
      %p227 = pnand %p225, %p226
      %p228 = pneg %p227
      // Predicated region
      $region9: #{tpu_custom_call.1} parent=5 // pred_check
        _
      $region10: #{tpu_custom_call.1} parent=5 // pred_check_branch
        %230 = sbr.rel (%p227) target = $region12
      $region11: #{tpu_custom_call.1} parent=5 // pred_region
        %s231 = ssub.s32 %s20, 1
        // Predicated region
        $region13: #{tpu_custom_call.1} parent=11 // pred_check
          %p232 = pneg %p107
        $region14: #{tpu_custom_call.1} parent=11 // pred_check_branch
          %234 = sbr.rel (%p232) target = $region16
        $region15: #{tpu_custom_call.1} parent=11 // pred_region
          _
        $region16: #{tpu_custom_call.1} parent=11 // pred_fallthru
          _
        // Predicated region
        $region17: #{tpu_custom_call.1} parent=11 // pred_check
          %p235 = pneg %p128
        $region18: #{tpu_custom_call.1} parent=11 // pred_check_branch
          %237 = sbr.rel (%p235) target = $region20
        $region19: #{tpu_custom_call.1} parent=11 // pred_region
          %s239 = ssub.s32 128, 128
          %240 = vsyncadd [#allocation10], %s239
          %s242 = sshll.u32 [#allocation9], 4
          %s243 = int_to_ptr.vmem [resolvable:$true] %s242
          %245 = dma.hbm_to_vmem [thread:$0]  %s3, 128, %s243, [#allocation10]
        $region20: #{tpu_custom_call.1} parent=11 // pred_fallthru
          _
        // Predicated region
        $region21: #{tpu_custom_call.1} parent=11 // pred_check
          %p246 = pneg %p149
        $region22: #{tpu_custom_call.1} parent=11 // pred_check_branch
          %248 = sbr.rel (%p246) target = $region24
        $region23: #{tpu_custom_call.1} parent=11 // pred_region
          _
        $region24: #{tpu_custom_call.1} parent=11 // pred_fallthru
          _
        // Predicated region
        $region25: #{tpu_custom_call.1} parent=11 // pred_check
          %p249 = pneg %p170
        $region26: #{tpu_custom_call.1} parent=11 // pred_check_branch
          %251 = sbr.rel (%p249) target = $region28
        $region27: #{tpu_custom_call.1} parent=11 // pred_region
          %s253 = ssub.s32 512, 512
          %254 = vsyncadd [#allocation10], %s253
          %s255 = sshll.u32 [#allocation11], 4
          %s256 = int_to_ptr.vmem [resolvable:$true] %s255
          %261 = dma.hbm_to_vmem [thread:$0]  %s5, 512, %s256, [#allocation10], 128, 128, 8
        $region28: #{tpu_custom_call.1} parent=11 // pred_fallthru
          _
        // Predicated region
        $region29: #{tpu_custom_call.1} parent=11 // pred_check
          %p262 = pneg %p191
        $region30: #{tpu_custom_call.1} parent=11 // pred_check_branch
          %264 = sbr.rel (%p262) target = $region32
        $region31: #{tpu_custom_call.1} parent=11 // pred_region
          _
        $region32: #{tpu_custom_call.1} parent=11 // pred_fallthru
          _
      $region12: #{tpu_custom_call.1} parent=5 // pred_fallthru
        _
      %p265 = scmp.lt.s32.totalorder %s20, 4
      // Predicated region
      $region33: #{tpu_custom_call.1} parent=5 // pred_check
        %p266 = pneg %p265
      $region34: #{tpu_custom_call.1} parent=5 // pred_check_branch
        %268 = sbr.rel (%p266) target = $region36
      $region35: #{tpu_custom_call.1} parent=5 // pred_region
        // Predicated region
        $region37: #{tpu_custom_call.1} parent=35 // pred_check
          %p269 = pneg %p54
        $region38: #{tpu_custom_call.1} parent=35 // pred_check_branch
          %271 = sbr.rel (%p269) target = $region40
        $region39: #{tpu_custom_call.1} parent=35 // pred_region
          %s272 = sand.u32 %s44, 1
          %s273 = scalar_lea.sflag [#allocation6], %s272
          %s274 = sand.u32 %s44, 1
          %s275 = smul.addr %s274, 32
          %s276 = scalar_lea.vmem [#allocation5], %s275
          %s278 = ssub.s32 512, 512
          %279 = vsyncadd %s273, %s278
          %s280 = smul.addr %s27, 8
          %s281 = sadd.s32 %s28, %s280
          %s282 = smul.addr %s281, 128
          %s283 = scalar_lea.hbm %s0, %s282
          %s284 = sshll.u32 %s276, 4
          %s285 = int_to_ptr.vmem [resolvable:$true] %s284
          %290 = dma.hbm_to_vmem [thread:$0]  %s283, 512, %s285, %s273, 256, 128, 8
        $region40: #{tpu_custom_call.1} parent=35 // pred_fallthru
          _
        // Predicated region
        $region41: #{tpu_custom_call.1} parent=35 // pred_check
          %p291 = pneg %p80
        $region42: #{tpu_custom_call.1} parent=35 // pred_check_branch
          %293 = sbr.rel (%p291) target = $region44
        $region43: #{tpu_custom_call.1} parent=35 // pred_region
          %s294 = sand.u32 %s70, 1
          %s295 = sand.u32 %s70, 1
          %s296 = smul.addr %s295, 32
          %s297 = scalar_lea.vmem [#allocation8], %s296
          %s298 = smul.addr %s28, 8
          %s299 = scalar_lea.vmem %s1, %s298
          // Predicated region
          $region45: #{tpu_custom_call.1} parent=43 // pred_check
            _
          $region46: #{tpu_custom_call.1} parent=43 // pred_check_branch
            %301 = sbr.rel (0) target = $region48
          $region47: #{tpu_custom_call.1} parent=43 // pred_region
            // Predicated region
            $region49: #{tpu_custom_call.1} parent=47 // pred_check
              _
            $region50: #{tpu_custom_call.1} parent=47 // pred_check_branch
              %303 = sbr.rel (0) target = $region52
            $region51: #{tpu_custom_call.1} parent=47 // pred_region
              // Predicated region
              $region64: #{tpu_custom_call.1} parent=51 // pred_check
                _
              $region65: #{tpu_custom_call.1} parent=51 // pred_check_branch
                %325 = sbr.rel (0) target = $region67
              $region66: #{tpu_custom_call.1} parent=51 // pred_region
                loop: start=0, step=1, limit=1
                $region68: #{tpu_custom_call.1} parent=66 // loop_pre_header
                  _
                $region69: #{tpu_custom_call.1} parent=66 // loop_header
                  %s327 = sphi 0, %s331
                  %p328 = scmp.ge.s32.totalorder %s327, 1
                  %s332 = sphi %s299, %s299
                  %s333 = sphi %s297, %s297
                $region70: #{tpu_custom_call.1} parent=66 // loop_header_branch
                  %330 = sbr.rel (%p328) target = $region74
                $region71: #{tpu_custom_call.1} parent=66 // loop_body
                  %v334 = vld [vmem:[%s332] sm:$0xff]
                  %335 = vst [vmem:[%s333] sm:$0xff] %v334
                  %v336 = vld [vmem:[%s332 + $0x10] sm:$0xff]
                  %337 = vst [vmem:[%s333 + $0x8] sm:$0xff] %v336
                  %v338 = vld [vmem:[%s332 + $0x20] sm:$0xff]
                  %339 = vst [vmem:[%s333 + $0x10] sm:$0xff] %v338
                  %v340 = vld [vmem:[%s332 + $0x30] sm:$0xff]
                  %341 = vst [vmem:[%s333 + $0x18] sm:$0xff] %v340
                $region72: #{tpu_custom_call.1} parent=66 // loop_footer
                  %s331 = sadd.s32 1, %s327
                $region73: #{tpu_custom_call.1} parent=66 // loop_footer_branch
                  %326 = sbr.rel target = $region69
                $region74: #{tpu_custom_call.1} parent=66 // loop_exit
                  _
              $region67: #{tpu_custom_call.1} parent=51 // pred_fallthru
                _
              // Predicated region
              $region75: #{tpu_custom_call.1} parent=51 // pred_check
                _
              $region76: #{tpu_custom_call.1} parent=51 // pred_check_branch
                %343 = sbr.rel target = $region78
              $region77: #{tpu_custom_call.1} parent=51 // pred_region
                _
              $region78: #{tpu_custom_call.1} parent=51 // pred_fallthru
                _
            $region52: #{tpu_custom_call.1} parent=47 // pred_fallthru
              _
            // Predicated region
            $region53: #{tpu_custom_call.1} parent=47 // pred_check
              _
            $region54: #{tpu_custom_call.1} parent=47 // pred_check_branch
              %305 = sbr.rel target = $region56
            $region55: #{tpu_custom_call.1} parent=47 // pred_region
              %s307 = ssub.s32 256, 1
              loop: start=0, step=1, limit=1
              $region57: #{tpu_custom_call.1} parent=55 // loop_pre_header
                _
              $region58: #{tpu_custom_call.1} parent=55 // loop_header
                %s309 = sphi 0, %s313
                %p310 = scmp.ge.s32.totalorder %s309, 1
                %s314 = sphi %s299, %s299
                %s315 = sphi %s297, %s297
              $region59: #{tpu_custom_call.1} parent=55 // loop_header_branch
                %312 = sbr.rel (%p310) target = $region63
              $region60: #{tpu_custom_call.1} parent=55 // loop_body
                %v316 = vld [vmem:[%s314] sm:%s307]
                %317 = vst [vmem:[%s315] sm:%s307] %v316
                %v318 = vld [vmem:[%s314 + $0x10] sm:%s307]
                %319 = vst [vmem:[%s315 + $0x8] sm:%s307] %v318
                %v320 = vld [vmem:[%s314 + $0x20] sm:%s307]
                %321 = vst [vmem:[%s315 + $0x10] sm:%s307] %v320
                %v322 = vld [vmem:[%s314 + $0x30] sm:%s307]
                %323 = vst [vmem:[%s315 + $0x18] sm:%s307] %v322
              $region61: #{tpu_custom_call.1} parent=55 // loop_footer
                %s313 = sadd.s32 1, %s309
              $region62: #{tpu_custom_call.1} parent=55 // loop_footer_branch
                %308 = sbr.rel target = $region58
              $region63: #{tpu_custom_call.1} parent=55 // loop_exit
                _
            $region56: #{tpu_custom_call.1} parent=47 // pred_fallthru
              _
          $region48: #{tpu_custom_call.1} parent=43 // pred_fallthru
            _
          %344 = vnop
        $region44: #{tpu_custom_call.1} parent=35 // pred_fallthru
          _
      $region36: #{tpu_custom_call.1} parent=5 // pred_fallthru
        _
      %p345 = scmp.le.s32.totalorder 1, %s20
      %p346 = scmp.lt.s32.totalorder %s20, 5
      %p347 = pnand %p345, %p346
      %p348 = pneg %p347
      // Predicated region
      $region79: #{tpu_custom_call.1} parent=5 // pred_check
        _
      $region80: #{tpu_custom_call.1} parent=5 // pred_check_branch
        %350 = sbr.rel (%p347) target = $region82
      $region81: #{tpu_custom_call.1} parent=5 // pred_region
        %s351 = ssub.s32 %s20, 1
        %s352 = sand.u32 %s47, 1
        %s353 = scalar_lea.sflag [#allocation6], %s352
        %s354 = sand.u32 %s47, 1
        %s355 = smul.addr %s354, 32
        %s356 = scalar_lea.vmem [#allocation5], %s355
        // Predicated region
        $region83: #{tpu_custom_call.1} parent=81 // pred_check
          %p357 = pneg %p60
        $region84: #{tpu_custom_call.1} parent=81 // pred_check_branch
          %359 = sbr.rel (%p357) target = $region86
        $region85: #{tpu_custom_call.1} parent=81 // pred_region
          %360 = dma.done %s353, 512
        $region86: #{tpu_custom_call.1} parent=81 // pred_fallthru
          _
        %s361 = sand.u32 %s73, 1
        %s362 = sand.u32 %s73, 1
        %s363 = smul.addr %s362, 32
        %s364 = scalar_lea.vmem [#allocation8], %s363
        // Predicated region
        $region87: #{tpu_custom_call.1} parent=81 // pred_check
          %p365 = pneg %p86
        $region88: #{tpu_custom_call.1} parent=81 // pred_check_branch
          %367 = sbr.rel (%p365) target = $region90
        $region89: #{tpu_custom_call.1} parent=81 // pred_region
          _
        $region90: #{tpu_custom_call.1} parent=81 // pred_fallthru
          _
        // Predicated region
        $region91: #{tpu_custom_call.1} parent=81 // pred_check
          %p368 = pneg %p128
        $region92: #{tpu_custom_call.1} parent=81 // pred_check_branch
          %370 = sbr.rel (%p368) target = $region94
        $region93: #{tpu_custom_call.1} parent=81 // pred_region
          %371 = dma.done [#allocation10], 128
        $region94: #{tpu_custom_call.1} parent=81 // pred_fallthru
          _
        // Predicated region
        $region95: #{tpu_custom_call.1} parent=81 // pred_check
          %p372 = pneg %p170
        $region96: #{tpu_custom_call.1} parent=81 // pred_check_branch
          %374 = sbr.rel (%p372) target = $region98
        $region97: #{tpu_custom_call.1} parent=81 // pred_region
          %375 = dma.done [#allocation10], 512
        $region98: #{tpu_custom_call.1} parent=81 // pred_fallthru
          _
        %s376 = sand.u32 %s47, 1
        %s377 = scalar_lea.sflag [#allocation6], %s376
        %s378 = sand.u32 %s47, 1
        %s379 = smul.addr %s378, 32
        %s380 = scalar_lea.vmem [#allocation5], %s379
        %p381 = pneg %p60
        %p382 = pneg %p57
        %s383 = sand.u32 %s73, 1
        %s384 = sand.u32 %s73, 1
        %s385 = smul.addr %s384, 32
        %s386 = scalar_lea.vmem [#allocation8], %s385
        %p387 = pneg %p86
        %p388 = pneg %p83
        %p389 = pneg %p107
        %p390 = pneg %p104
        %p391 = pneg %p128
        %p392 = pneg %p125
        %p393 = pneg %p149
        %p394 = pneg %p146
        %p395 = pneg %p170
        %p396 = pneg %p167
        %p397 = pneg %p191
        %p398 = pneg %p188
        %p399 = pneg %p217
        %p400 = pneg %p214
        %s401 = sand.u32 %s204, 1
        %s402 = scalar_lea.sflag [#allocation7], %s401
        %s403 = sand.u32 %s204, 1
        %s404 = smul.addr %s403, 8
        %s405 = scalar_lea.vmem [#allocation12], %s404
        %p406 = scmp.eq.s32.totalorder %s30, 0
        // Predicated region
        $region99: #{tpu_custom_call.1} parent=81 // pred_check
          %p407 = pneg %p406
        $region100: #{tpu_custom_call.1} parent=81 // pred_check_branch
          %409 = sbr.rel (%p407) target = $region102
        $region101: #{tpu_custom_call.1} parent=81 // pred_region
          %vm410 = vcmask 7168
          %411 = vst.msk [vmem:[#allocation2] sm:$0xff] %vm410, -inf
          %412 = vst.msk [vmem:[#allocation2 + $0x8] sm:$0xff] %vm410, -inf
          %413 = vst.msk [vmem:[#allocation2 + $0x10] sm:$0xff] %vm410, -inf
          %414 = vst.msk [vmem:[#allocation2 + $0x18] sm:$0xff] %vm410, -inf
          %415 = vst.msk [vmem:[#allocation3] sm:$0xff] %vm410, 0.0
          %416 = vst.msk [vmem:[#allocation3 + $0x8] sm:$0xff] %vm410, 0.0
          %417 = vst.msk [vmem:[#allocation3 + $0x10] sm:$0xff] %vm410, 0.0
          %418 = vst.msk [vmem:[#allocation3 + $0x18] sm:$0xff] %vm410, 0.0
          %vm419 = vcmask 64512
          %420 = vst.msk [vmem:[#allocation4] sm:$0xff] %vm419, 0.0
          %421 = vst.msk [vmem:[#allocation4 + $0x8] sm:$0xff] %vm419, 0.0
          %422 = vst.msk [vmem:[#allocation4 + $0x10] sm:$0xff] %vm419, 0.0
          %423 = vst.msk [vmem:[#allocation4 + $0x18] sm:$0xff] %vm419, 0.0
        $region102: #{tpu_custom_call.1} parent=81 // pred_fallthru
          _
        %v424 = vld [vmem:[%s356] sm:$0xff]
        %v425 = vld [vmem:[%s356 + $0x8] sm:$0xff]
        %v426 = vld [vmem:[%s356 + $0x10] sm:$0xff]
        %v427 = vld [vmem:[%s356 + $0x18] sm:$0xff]
        %v428 = vld [vmem:[%s4] sm:$0xff]
        %v429 = vld [vmem:[%s4 + $0x8] sm:$0xff]
        %v430 = vld [vmem:[%s4 + $0x10] sm:$0xff]
        %v431 = vld [vmem:[%s4 + $0x18] sm:$0xff]
        %v432 = vld [vmem:[%s4 + $0x20] sm:$0xff]
        %v433 = vld [vmem:[%s4 + $0x28] sm:$0xff]
        %v434 = vld [vmem:[%s4 + $0x30] sm:$0xff]
        %v435 = vld [vmem:[%s4 + $0x38] sm:$0xff]
        %vm436 = vcmask 261120
        %v438 = vsel %vm436, %v428, 0
        %v441 = vsel %vm436, %v429, 0
        %v444 = vsel %vm436, %v430, 0
        %v447 = vsel %vm436, %v431, 0
        %v450 = vsel %vm436, %v432, 0
        %v453 = vsel %vm436, %v433, 0
        %v456 = vsel %vm436, %v434, 0
        %v459 = vsel %vm436, %v435, 0
        %461 = vmatprep.subr.mxu0 0.0
        %462 = vmatpush1.msra.mxu0 0.0
        %463 = vmatprep.subr.mxu0 0.0
        %464 = vmatpush1.msra.mxu0 0.0
        %465 = vmatprep.subr.mxu0 0.0
        %466 = vmatpush1.msra.mxu0 0.0
        %467 = vmatprep.subr.mxu0 0.0
        %468 = vmatpush1.msra.mxu0 0.0
        %469 = vmatprep.subr.mxu0 0.0
        %470 = vmatpush1.msra.mxu0 0.0
        %471 = vmatprep.subr.mxu0 0.0
        %472 = vmatpush1.msra.mxu0 0.0
        %473 = vmatprep.subr.mxu0 0.0
        %474 = vmatpush1.msra.mxu0 0.0
        %475 = vmatprep.subr.mxu0 0.0
        %476 = vmatpush1.msra.mxu0 0.0
        %477 = vmatprep.subr.mxu0 0.0
        %478 = vmatpush1.msra.mxu0 0.0
        %479 = vmatprep.subr.mxu0 0.0
        %480 = vmatpush1.msra.mxu0 0.0
        %481 = vmatprep.subr.mxu0 0.0
        %482 = vmatpush1.msra.mxu0 0.0
        %483 = vmatprep.subr.mxu0 0.0
        %484 = vmatpush1.msra.mxu0 0.0
        %485 = vmatprep.subr.mxu0 0.0
        %486 = vmatpush1.msra.mxu0 %v427
        %487 = vmatprep.subr.mxu0 0.0
        %488 = vmatpush1.msra.mxu0 %v426
        %489 = vmatprep.subr.mxu0 0.0
        %490 = vmatpush1.msra.mxu0 %v425
        %491 = vmatprep.subr.mxu0 0.0
        %492 = vmatpush1.msra.mxu0 %v424
        %493 = vmatprep.subr.mxu0 0.0
        %494 = vmatpush2.msra.mxu0 0.0
        %495 = vmatprep.subr.mxu0 0.0
        %496 = vmatpush2.msra.mxu0 0.0
        %497 = vmatprep.subr.mxu0 0.0
        %498 = vmatpush2.msra.mxu0 0.0
        %499 = vmatprep.subr.mxu0 0.0
        %500 = vmatpush2.msra.mxu0 0.0
        %501 = vmatprep.subr.mxu0 0.0
        %502 = vmatpush2.msra.mxu0 0.0
        %503 = vmatprep.subr.mxu0 0.0
        %504 = vmatpush2.msra.mxu0 0.0
        %505 = vmatprep.subr.mxu0 0.0
        %506 = vmatpush2.msra.mxu0 0.0
        %507 = vmatprep.subr.mxu0 0.0
        %508 = vmatpush2.msra.mxu0 0.0
        %509 = vmatprep.subr.mxu0 0.0
        %510 = vmatpush2.msra.mxu0 0.0
        %511 = vmatprep.subr.mxu0 0.0
        %512 = vmatpush2.msra.mxu0 0.0
        %513 = vmatprep.subr.mxu0 0.0
        %514 = vmatpush2.msra.mxu0 0.0
        %515 = vmatprep.subr.mxu0 0.0
        %516 = vmatpush2.msra.mxu0 0.0
        %517 = vmatprep.subr.mxu0 0.0
        %518 = vmatpush2.msra.mxu0 0.0
        %519 = vmatprep.subr.mxu0 0.0
        %520 = vmatpush2.msra.mxu0 0.0
        %521 = vmatprep.subr.mxu0 0.0
        %522 = vmatpush2.msra.mxu0 0.0
        %523 = vmatprep.subr.mxu0 0.0
        %524 = vmatpush2.msra.mxu0 0.0
        %525 = vmatprep.mubr.f32.mxu0 0.0
        %526 = vmatmul.mubr.f32.gmra.mxu0 %v438
        %v527 = vpop.f32.mrf.mxu0
        %v528 = vadd.f32 0.0, %v527
        %v529 = vpop.f32.mrf.mxu0
        %530 = vmatprep.mubr.f32.mxu0 0.0
        %531 = vmatmul.mubr.f32.gmra.mxu0 %v441
        %v532 = vpop.f32.mrf.mxu0
        %v533 = vadd.f32 0.0, %v532
        %v534 = vpop.f32.mrf.mxu0
        %535 = vmatprep.mubr.f32.mxu0 0.0
        %536 = vmatmul.mubr.f32.gmra.mxu0 %v444
        %v537 = vpop.f32.mrf.mxu0
        %v538 = vadd.f32 0.0, %v537
        %v539 = vpop.f32.mrf.mxu0
        %540 = vmatprep.mubr.f32.mxu0 0.0
        %541 = vmatmul.mubr.f32.gmra.mxu0 %v447
        %v542 = vpop.f32.mrf.mxu0
        %v543 = vadd.f32 0.0, %v542
        %v544 = vpop.f32.mrf.mxu0
        %545 = vmatprep.mubr.f32.mxu0 0.0
        %546 = vmatmul.mubr.f32.gmra.mxu0 %v450
        %v547 = vpop.f32.mrf.mxu0
        %v548 = vadd.f32 0.0, %v547
        %v549 = vpop.f32.mrf.mxu0
        %550 = vmatprep.mubr.f32.mxu0 0.0
        %551 = vmatmul.mubr.f32.gmra.mxu0 %v453
        %v552 = vpop.f32.mrf.mxu0
        %v553 = vadd.f32 0.0, %v552
        %v554 = vpop.f32.mrf.mxu0
        %555 = vmatprep.mubr.f32.mxu0 0.0
        %556 = vmatmul.mubr.f32.gmra.mxu0 %v456
        %v557 = vpop.f32.mrf.mxu0
        %v558 = vadd.f32 0.0, %v557
        %v559 = vpop.f32.mrf.mxu0
        %560 = vmatprep.mubr.f32.mxu0 0.0
        %561 = vmatmul.mubr.f32.gmra.mxu0 %v459
        %v562 = vpop.f32.mrf.mxu0
        %v563 = vadd.f32 0.0, %v562
        %v564 = vpop.f32.mrf.mxu0
        %565 = vdwg.mxu0
        %v566 = vld [vmem:[%s364] sm:$0xff]
        %v567 = vld [vmem:[%s364 + $0x8] sm:$0xff]
        %v568 = vld [vmem:[%s364 + $0x10] sm:$0xff]
        %v569 = vld [vmem:[%s364 + $0x18] sm:$0xff]
        %v570 = vadd.f32 %v528, %v566
        %v571 = vadd.f32 %v533, %v567
        %v572 = vadd.f32 %v538, %v568
        %v573 = vadd.f32 %v543, %v569
        %v574 = vld [vmem:[%s2] sm:$0xff]
        %vm575 = vcmask 64512
        %v577 = vsel %vm575, %v574, 0
        %579 = vmatprep.subr.mxu0 0.0
        %580 = vmatpush1.msra.mxu0 0.0
        %581 = vmatprep.subr.mxu0 0.0
        %582 = vmatpush1.msra.mxu0 0.0
        %583 = vmatprep.subr.mxu0 0.0
        %584 = vmatpush1.msra.mxu0 0.0
        %585 = vmatprep.subr.mxu0 0.0
        %586 = vmatpush1.msra.mxu0 0.0
        %587 = vmatprep.subr.mxu0 0.0
        %588 = vmatpush1.msra.mxu0 0.0
        %589 = vmatprep.subr.mxu0 0.0
        %590 = vmatpush1.msra.mxu0 0.0
        %591 = vmatprep.subr.mxu0 0.0
        %592 = vmatpush1.msra.mxu0 0.0
        %593 = vmatprep.subr.mxu0 0.0
        %594 = vmatpush1.msra.mxu0 0.0
        %595 = vmatprep.subr.mxu0 0.0
        %596 = vmatpush1.msra.mxu0 0.0
        %597 = vmatprep.subr.mxu0 0.0
        %598 = vmatpush1.msra.mxu0 0.0
        %599 = vmatprep.subr.mxu0 0.0
        %600 = vmatpush1.msra.mxu0 0.0
        %601 = vmatprep.subr.mxu0 0.0
        %602 = vmatpush1.msra.mxu0 0.0
        %603 = vmatprep.subr.mxu0 0.0
        %604 = vmatpush1.msra.mxu0 0.0
        %605 = vmatprep.subr.mxu0 0.0
        %606 = vmatpush1.msra.mxu0 0.0
        %607 = vmatprep.subr.mxu0 0.0
        %608 = vmatpush1.msra.mxu0 0.0
        %609 = vmatprep.subr.mxu0 0.0
        %610 = vmatpush1.msra.mxu0 %v570
        %611 = vmatprep.subr.mxu0 0.0
        %612 = vmatpush2.msra.mxu0 0.0
        %613 = vmatprep.subr.mxu0 0.0
        %614 = vmatpush2.msra.mxu0 0.0
        %615 = vmatprep.subr.mxu0 0.0
        %616 = vmatpush2.msra.mxu0 0.0
        %617 = vmatprep.subr.mxu0 0.0
        %618 = vmatpush2.msra.mxu0 0.0
        %619 = vmatprep.subr.mxu0 0.0
        %620 = vmatpush2.msra.mxu0 0.0
        %621 = vmatprep.subr.mxu0 0.0
        %622 = vmatpush2.msra.mxu0 0.0
        %623 = vmatprep.subr.mxu0 0.0
        %624 = vmatpush2.msra.mxu0 0.0
        %625 = vmatprep.subr.mxu0 0.0
        %626 = vmatpush2.msra.mxu0 0.0
        %627 = vmatprep.subr.mxu0 0.0
        %628 = vmatpush2.msra.mxu0 0.0
        %629 = vmatprep.subr.mxu0 0.0
        %630 = vmatpush2.msra.mxu0 0.0
        %631 = vmatprep.subr.mxu0 0.0
        %632 = vmatpush2.msra.mxu0 0.0
        %633 = vmatprep.subr.mxu0 0.0
        %634 = vmatpush2.msra.mxu0 0.0
        %635 = vmatprep.subr.mxu0 0.0
        %636 = vmatpush2.msra.mxu0 0.0
        %637 = vmatprep.subr.mxu0 0.0
        %638 = vmatpush2.msra.mxu0 0.0
        %639 = vmatprep.subr.mxu0 0.0
        %640 = vmatpush2.msra.mxu0 0.0
        %641 = vmatprep.subr.mxu0 0.0
        %642 = vmatpush2.msra.mxu0 0.0
        %643 = vmatprep.mubr.f32.mxu0 0.0
        %644 = vmatmul.mubr.f32.gmra.mxu0 %v577
        %v645 = vpop.f32.mrf.mxu0
        %v646 = vadd.f32 0.0, %v645
        %v647 = vpop.f32.mrf.mxu0
        %648 = vdwg.mxu0
        %v649 = vld [vmem:[#allocation2] sm:$0xff]
        %650 = vmax.xlane.f32.xlu0 %v646
        %v651 = vpop.xlane.xlu0 %650
        %v652 = vmax.f32 %v649, %v651
        %v653 = vsub.f32 %v649, %v652
        %v654 = vmul.f32 %v653, 1.442695
        %v655 = vpow.pop %v654
        %657 = vset.pattern.permute.xlu0 0
        %658 = vperm.xlu0 %657, %v652
        %v659 = vpop.permute.xlu0 %658
        %v661 = vsub.f32 %v646, %v659
        %v662 = vmul.f32 %v661, 1.442695
        %v663 = vpow.pop %v662
        %v664 = vld [vmem:[#allocation3] sm:$0xff]
        %v665 = vmul.f32 %v655, %v664
        %666 = vadd.xlane.f32.xlu0 %v663
        %v667 = vpop.xlane.xlu0 %666
        %v668 = vadd.f32 %v665, %v667
        %vm669 = vcmask 7168
        %670 = vst.msk [vmem:[#allocation3] sm:$0xff] %vm669, %v668
        %671 = vmatprep.subr.mxu0 0.0
        %672 = vmatpush1.xpose.msra.mxu0 0.0
        %673 = vmatprep.subr.mxu0 0.0
        %674 = vmatpush1.xpose.msra.mxu0 0.0
        %675 = vmatprep.subr.mxu0 0.0
        %676 = vmatpush1.xpose.msra.mxu0 0.0
        %677 = vmatprep.subr.mxu0 0.0
        %678 = vmatpush1.xpose.msra.mxu0 0.0
        %679 = vmatprep.subr.mxu0 0.0
        %680 = vmatpush1.xpose.msra.mxu0 0.0
        %681 = vmatprep.subr.mxu0 0.0
        %682 = vmatpush1.xpose.msra.mxu0 0.0
        %683 = vmatprep.subr.mxu0 0.0
        %684 = vmatpush1.xpose.msra.mxu0 0.0
        %685 = vmatprep.subr.mxu0 0.0
        %686 = vmatpush1.xpose.msra.mxu0 0.0
        %687 = vmatprep.subr.mxu0 0.0
        %688 = vmatpush1.xpose.msra.mxu0 0.0
        %689 = vmatprep.subr.mxu0 0.0
        %690 = vmatpush1.xpose.msra.mxu0 0.0
        %691 = vmatprep.subr.mxu0 0.0
        %692 = vmatpush1.xpose.msra.mxu0 0.0
        %693 = vmatprep.subr.mxu0 0.0
        %694 = vmatpush1.xpose.msra.mxu0 0.0
        %695 = vmatprep.subr.mxu0 0.0
        %696 = vmatpush1.xpose.msra.mxu0 0.0
        %697 = vmatprep.subr.mxu0 0.0
        %698 = vmatpush1.xpose.msra.mxu0 0.0
        %699 = vmatprep.subr.mxu0 0.0
        %700 = vmatpush1.xpose.msra.mxu0 0.0
        %701 = vmatprep.subr.mxu0 0.0
        %702 = vmatpush1.xpose.msra.mxu0 %v548
        %703 = vmatprep.subr.mxu0 0.0
        %704 = vmatpush2.xpose.msra.mxu0 0.0
        %705 = vmatprep.subr.mxu0 0.0
        %706 = vmatpush2.xpose.msra.mxu0 0.0
        %707 = vmatprep.subr.mxu0 0.0
        %708 = vmatpush2.xpose.msra.mxu0 0.0
        %709 = vmatprep.subr.mxu0 0.0
        %710 = vmatpush2.xpose.msra.mxu0 0.0
        %711 = vmatprep.subr.mxu0 0.0
        %712 = vmatpush2.xpose.msra.mxu0 0.0
        %713 = vmatprep.subr.mxu0 0.0
        %714 = vmatpush2.xpose.msra.mxu0 0.0
        %715 = vmatprep.subr.mxu0 0.0
        %716 = vmatpush2.xpose.msra.mxu0 0.0
        %717 = vmatprep.subr.mxu0 0.0
        %718 = vmatpush2.xpose.msra.mxu0 0.0
        %719 = vmatprep.subr.mxu0 0.0
        %720 = vmatpush2.xpose.msra.mxu0 0.0
        %721 = vmatprep.subr.mxu0 0.0
        %722 = vmatpush2.xpose.msra.mxu0 0.0
        %723 = vmatprep.subr.mxu0 0.0
        %724 = vmatpush2.xpose.msra.mxu0 0.0
        %725 = vmatprep.subr.mxu0 0.0
        %726 = vmatpush2.xpose.msra.mxu0 0.0
        %727 = vmatprep.subr.mxu0 0.0
        %728 = vmatpush2.xpose.msra.mxu0 0.0
        %729 = vmatprep.subr.mxu0 0.0
        %730 = vmatpush2.xpose.msra.mxu0 0.0
        %731 = vmatprep.subr.mxu0 0.0
        %732 = vmatpush2.xpose.msra.mxu0 0.0
        %733 = vmatprep.subr.mxu0 0.0
        %734 = vmatpush2.xpose.msra.mxu0 0.0
        %735 = vmatprep.mubr.f32.mxu0 0.0
        %736 = vmatmul.mubr.f32.gmra.mxu0 %v663
        %v737 = vpop.f32.mrf.mxu0
        %v738 = vadd.f32 0.0, %v737
        %v739 = vpop.f32.mrf.mxu0
        %740 = vdwg.mxu0
        %v741 = vld [vmem:[#allocation4] sm:$0xff]
        %743 = vset.pattern.permute.xlu0 0
        %744 = vperm.xlu0 %743, %v655
        %v745 = vpop.permute.xlu0 %744
        %v747 = vmul.f32 %v745, %v741
        %v748 = vadd.f32 %v747, %v738
        %749 = vst.msk [vmem:[#allocation4] sm:$0xff] %vm575, %v748
        %750 = vst.msk [vmem:[#allocation2] sm:$0xff] %vm669, %v652
        %s751 = scalar_lea.vmem %s2, 8
        %v752 = vld [vmem:[%s751] sm:$0xff]
        %v754 = vsel %vm575, %v752, 0
        %756 = vmatprep.subr.mxu0 0.0
        %757 = vmatpush1.msra.mxu0 0.0
        %758 = vmatprep.subr.mxu0 0.0
        %759 = vmatpush1.msra.mxu0 0.0
        %760 = vmatprep.subr.mxu0 0.0
        %761 = vmatpush1.msra.mxu0 0.0
        %762 = vmatprep.subr.mxu0 0.0
        %763 = vmatpush1.msra.mxu0 0.0
        %764 = vmatprep.subr.mxu0 0.0
        %765 = vmatpush1.msra.mxu0 0.0
        %766 = vmatprep.subr.mxu0 0.0
        %767 = vmatpush1.msra.mxu0 0.0
        %768 = vmatprep.subr.mxu0 0.0
        %769 = vmatpush1.msra.mxu0 0.0
        %770 = vmatprep.subr.mxu0 0.0
        %771 = vmatpush1.msra.mxu0 0.0
        %772 = vmatprep.subr.mxu0 0.0
        %773 = vmatpush1.msra.mxu0 0.0
        %774 = vmatprep.subr.mxu0 0.0
        %775 = vmatpush1.msra.mxu0 0.0
        %776 = vmatprep.subr.mxu0 0.0
        %777 = vmatpush1.msra.mxu0 0.0
        %778 = vmatprep.subr.mxu0 0.0
        %779 = vmatpush1.msra.mxu0 0.0
        %780 = vmatprep.subr.mxu0 0.0
        %781 = vmatpush1.msra.mxu0 0.0
        %782 = vmatprep.subr.mxu0 0.0
        %783 = vmatpush1.msra.mxu0 0.0
        %784 = vmatprep.subr.mxu0 0.0
        %785 = vmatpush1.msra.mxu0 0.0
        %786 = vmatprep.subr.mxu0 0.0
        %787 = vmatpush1.msra.mxu0 %v571
        %788 = vmatprep.subr.mxu0 0.0
        %789 = vmatpush2.msra.mxu0 0.0
        %790 = vmatprep.subr.mxu0 0.0
        %791 = vmatpush2.msra.mxu0 0.0
        %792 = vmatprep.subr.mxu0 0.0
        %793 = vmatpush2.msra.mxu0 0.0
        %794 = vmatprep.subr.mxu0 0.0
        %795 = vmatpush2.msra.mxu0 0.0
        %796 = vmatprep.subr.mxu0 0.0
        %797 = vmatpush2.msra.mxu0 0.0
        %798 = vmatprep.subr.mxu0 0.0
        %799 = vmatpush2.msra.mxu0 0.0
        %800 = vmatprep.subr.mxu0 0.0
        %801 = vmatpush2.msra.mxu0 0.0
        %802 = vmatprep.subr.mxu0 0.0
        %803 = vmatpush2.msra.mxu0 0.0
        %804 = vmatprep.subr.mxu0 0.0
        %805 = vmatpush2.msra.mxu0 0.0
        %806 = vmatprep.subr.mxu0 0.0
        %807 = vmatpush2.msra.mxu0 0.0
        %808 = vmatprep.subr.mxu0 0.0
        %809 = vmatpush2.msra.mxu0 0.0
        %810 = vmatprep.subr.mxu0 0.0
        %811 = vmatpush2.msra.mxu0 0.0
        %812 = vmatprep.subr.mxu0 0.0
        %813 = vmatpush2.msra.mxu0 0.0
        %814 = vmatprep.subr.mxu0 0.0
        %815 = vmatpush2.msra.mxu0 0.0
        %816 = vmatprep.subr.mxu0 0.0
        %817 = vmatpush2.msra.mxu0 0.0
        %818 = vmatprep.subr.mxu0 0.0
        %819 = vmatpush2.msra.mxu0 0.0
        %820 = vmatprep.mubr.f32.mxu0 0.0
        %821 = vmatmul.mubr.f32.gmra.mxu0 %v754
        %v822 = vpop.f32.mrf.mxu0
        %v823 = vadd.f32 0.0, %v822
        %v824 = vpop.f32.mrf.mxu0
        %825 = vdwg.mxu0
        %s826 = scalar_lea.vmem [#allocation2], 8
        %v827 = vld [vmem:[%s826] sm:$0xff]
        %828 = vmax.xlane.f32.xlu0 %v823
        %v829 = vpop.xlane.xlu0 %828
        %v830 = vmax.f32 %v827, %v829
        %v831 = vsub.f32 %v827, %v830
        %v832 = vmul.f32 %v831, 1.442695
        %v833 = vpow.pop %v832
        %835 = vset.pattern.permute.xlu0 0
        %836 = vperm.xlu0 %835, %v830
        %v837 = vpop.permute.xlu0 %836
        %v839 = vsub.f32 %v823, %v837
        %v840 = vmul.f32 %v839, 1.442695
        %v841 = vpow.pop %v840
        %s842 = scalar_lea.vmem [#allocation3], 8
        %v843 = vld [vmem:[%s842] sm:$0xff]
        %v844 = vmul.f32 %v833, %v843
        %845 = vadd.xlane.f32.xlu0 %v841
        %v846 = vpop.xlane.xlu0 %845
        %v847 = vadd.f32 %v844, %v846
        %848 = vst.msk [vmem:[%s842] sm:$0xff] %vm669, %v847
        %849 = vmatprep.subr.mxu0 0.0
        %850 = vmatpush1.xpose.msra.mxu0 0.0
        %851 = vmatprep.subr.mxu0 0.0
        %852 = vmatpush1.xpose.msra.mxu0 0.0
        %853 = vmatprep.subr.mxu0 0.0
        %854 = vmatpush1.xpose.msra.mxu0 0.0
        %855 = vmatprep.subr.mxu0 0.0
        %856 = vmatpush1.xpose.msra.mxu0 0.0
        %857 = vmatprep.subr.mxu0 0.0
        %858 = vmatpush1.xpose.msra.mxu0 0.0
        %859 = vmatprep.subr.mxu0 0.0
        %860 = vmatpush1.xpose.msra.mxu0 0.0
        %861 = vmatprep.subr.mxu0 0.0
        %862 = vmatpush1.xpose.msra.mxu0 0.0
        %863 = vmatprep.subr.mxu0 0.0
        %864 = vmatpush1.xpose.msra.mxu0 0.0
        %865 = vmatprep.subr.mxu0 0.0
        %866 = vmatpush1.xpose.msra.mxu0 0.0
        %867 = vmatprep.subr.mxu0 0.0
        %868 = vmatpush1.xpose.msra.mxu0 0.0
        %869 = vmatprep.subr.mxu0 0.0
        %870 = vmatpush1.xpose.msra.mxu0 0.0
        %871 = vmatprep.subr.mxu0 0.0
        %872 = vmatpush1.xpose.msra.mxu0 0.0
        %873 = vmatprep.subr.mxu0 0.0
        %874 = vmatpush1.xpose.msra.mxu0 0.0
        %875 = vmatprep.subr.mxu0 0.0
        %876 = vmatpush1.xpose.msra.mxu0 0.0
        %877 = vmatprep.subr.mxu0 0.0
        %878 = vmatpush1.xpose.msra.mxu0 0.0
        %879 = vmatprep.subr.mxu0 0.0
        %880 = vmatpush1.xpose.msra.mxu0 %v553
        %881 = vmatprep.subr.mxu0 0.0
        %882 = vmatpush2.xpose.msra.mxu0 0.0
        %883 = vmatprep.subr.mxu0 0.0
        %884 = vmatpush2.xpose.msra.mxu0 0.0
        %885 = vmatprep.subr.mxu0 0.0
        %886 = vmatpush2.xpose.msra.mxu0 0.0
        %887 = vmatprep.subr.mxu0 0.0
        %888 = vmatpush2.xpose.msra.mxu0 0.0
        %889 = vmatprep.subr.mxu0 0.0
        %890 = vmatpush2.xpose.msra.mxu0 0.0
        %891 = vmatprep.subr.mxu0 0.0
        %892 = vmatpush2.xpose.msra.mxu0 0.0
        %893 = vmatprep.subr.mxu0 0.0
        %894 = vmatpush2.xpose.msra.mxu0 0.0
        %895 = vmatprep.subr.mxu0 0.0
        %896 = vmatpush2.xpose.msra.mxu0 0.0
        %897 = vmatprep.subr.mxu0 0.0
        %898 = vmatpush2.xpose.msra.mxu0 0.0
        %899 = vmatprep.subr.mxu0 0.0
        %900 = vmatpush2.xpose.msra.mxu0 0.0
        %901 = vmatprep.subr.mxu0 0.0
        %902 = vmatpush2.xpose.msra.mxu0 0.0
        %903 = vmatprep.subr.mxu0 0.0
        %904 = vmatpush2.xpose.msra.mxu0 0.0
        %905 = vmatprep.subr.mxu0 0.0
        %906 = vmatpush2.xpose.msra.mxu0 0.0
        %907 = vmatprep.subr.mxu0 0.0
        %908 = vmatpush2.xpose.msra.mxu0 0.0
        %909 = vmatprep.subr.mxu0 0.0
        %910 = vmatpush2.xpose.msra.mxu0 0.0
        %911 = vmatprep.subr.mxu0 0.0
        %912 = vmatpush2.xpose.msra.mxu0 0.0
        %913 = vmatprep.mubr.f32.mxu0 0.0
        %914 = vmatmul.mubr.f32.gmra.mxu0 %v841
        %v915 = vpop.f32.mrf.mxu0
        %v916 = vadd.f32 0.0, %v915
        %v917 = vpop.f32.mrf.mxu0
        %918 = vdwg.mxu0
        %s919 = scalar_lea.vmem [#allocation4], 8
        %v920 = vld [vmem:[%s919] sm:$0xff]
        %922 = vset.pattern.permute.xlu0 0
        %923 = vperm.xlu0 %922, %v833
        %v924 = vpop.permute.xlu0 %923
        %v926 = vmul.f32 %v924, %v920
        %v927 = vadd.f32 %v926, %v916
        %928 = vst.msk [vmem:[%s919] sm:$0xff] %vm575, %v927
        %929 = vst.msk [vmem:[%s826] sm:$0xff] %vm669, %v830
        %s930 = scalar_lea.vmem %s2, 16
        %v931 = vld [vmem:[%s930] sm:$0xff]
        %v933 = vsel %vm575, %v931, 0
        %935 = vmatprep.subr.mxu0 0.0
        %936 = vmatpush1.msra.mxu0 0.0
        %937 = vmatprep.subr.mxu0 0.0
        %938 = vmatpush1.msra.mxu0 0.0
        %939 = vmatprep.subr.mxu0 0.0
        %940 = vmatpush1.msra.mxu0 0.0
        %941 = vmatprep.subr.mxu0 0.0
        %942 = vmatpush1.msra.mxu0 0.0
        %943 = vmatprep.subr.mxu0 0.0
        %944 = vmatpush1.msra.mxu0 0.0
        %945 = vmatprep.subr.mxu0 0.0
        %946 = vmatpush1.msra.mxu0 0.0
        %947 = vmatprep.subr.mxu0 0.0
        %948 = vmatpush1.msra.mxu0 0.0
        %949 = vmatprep.subr.mxu0 0.0
        %950 = vmatpush1.msra.mxu0 0.0
        %951 = vmatprep.subr.mxu0 0.0
        %952 = vmatpush1.msra.mxu0 0.0
        %953 = vmatprep.subr.mxu0 0.0
        %954 = vmatpush1.msra.mxu0 0.0
        %955 = vmatprep.subr.mxu0 0.0
        %956 = vmatpush1.msra.mxu0 0.0
        %957 = vmatprep.subr.mxu0 0.0
        %958 = vmatpush1.msra.mxu0 0.0
        %959 = vmatprep.subr.mxu0 0.0
        %960 = vmatpush1.msra.mxu0 0.0
        %961 = vmatprep.subr.mxu0 0.0
        %962 = vmatpush1.msra.mxu0 0.0
        %963 = vmatprep.subr.mxu0 0.0
        %964 = vmatpush1.msra.mxu0 0.0
        %965 = vmatprep.subr.mxu0 0.0
        %966 = vmatpush1.msra.mxu0 %v572
        %967 = vmatprep.subr.mxu0 0.0
        %968 = vmatpush2.msra.mxu0 0.0
        %969 = vmatprep.subr.mxu0 0.0
        %970 = vmatpush2.msra.mxu0 0.0
        %971 = vmatprep.subr.mxu0 0.0
        %972 = vmatpush2.msra.mxu0 0.0
        %973 = vmatprep.subr.mxu0 0.0
        %974 = vmatpush2.msra.mxu0 0.0
        %975 = vmatprep.subr.mxu0 0.0
        %976 = vmatpush2.msra.mxu0 0.0
        %977 = vmatprep.subr.mxu0 0.0
        %978 = vmatpush2.msra.mxu0 0.0
        %979 = vmatprep.subr.mxu0 0.0
        %980 = vmatpush2.msra.mxu0 0.0
        %981 = vmatprep.subr.mxu0 0.0
        %982 = vmatpush2.msra.mxu0 0.0
        %983 = vmatprep.subr.mxu0 0.0
        %984 = vmatpush2.msra.mxu0 0.0
        %985 = vmatprep.subr.mxu0 0.0
        %986 = vmatpush2.msra.mxu0 0.0
        %987 = vmatprep.subr.mxu0 0.0
        %988 = vmatpush2.msra.mxu0 0.0
        %989 = vmatprep.subr.mxu0 0.0
        %990 = vmatpush2.msra.mxu0 0.0
        %991 = vmatprep.subr.mxu0 0.0
        %992 = vmatpush2.msra.mxu0 0.0
        %993 = vmatprep.subr.mxu0 0.0
        %994 = vmatpush2.msra.mxu0 0.0
        %995 = vmatprep.subr.mxu0 0.0
        %996 = vmatpush2.msra.mxu0 0.0
        %997 = vmatprep.subr.mxu0 0.0
        %998 = vmatpush2.msra.mxu0 0.0
        %999 = vmatprep.mubr.f32.mxu0 0.0
        %1000 = vmatmul.mubr.f32.gmra.mxu0 %v933
        %v1001 = vpop.f32.mrf.mxu0
        %v1002 = vadd.f32 0.0, %v1001
        %v1003 = vpop.f32.mrf.mxu0
        %1004 = vdwg.mxu0
        %s1005 = scalar_lea.vmem [#allocation2], 16
        %v1006 = vld [vmem:[%s1005] sm:$0xff]
        %1007 = vmax.xlane.f32.xlu0 %v1002
        %v1008 = vpop.xlane.xlu0 %1007
        %v1009 = vmax.f32 %v1006, %v1008
        %v1010 = vsub.f32 %v1006, %v1009
        %v1011 = vmul.f32 %v1010, 1.442695
        %v1012 = vpow.pop %v1011
        %1014 = vset.pattern.permute.xlu0 0
        %1015 = vperm.xlu0 %1014, %v1009
        %v1016 = vpop.permute.xlu0 %1015
        %v1018 = vsub.f32 %v1002, %v1016
        %v1019 = vmul.f32 %v1018, 1.442695
        %v1020 = vpow.pop %v1019
        %s1021 = scalar_lea.vmem [#allocation3], 16
        %v1022 = vld [vmem:[%s1021] sm:$0xff]
        %v1023 = vmul.f32 %v1012, %v1022
        %1024 = vadd.xlane.f32.xlu0 %v1020
        %v1025 = vpop.xlane.xlu0 %1024
        %v1026 = vadd.f32 %v1023, %v1025
        %1027 = vst.msk [vmem:[%s1021] sm:$0xff] %vm669, %v1026
        %1028 = vmatprep.subr.mxu0 0.0
        %1029 = vmatpush1.xpose.msra.mxu0 0.0
        %1030 = vmatprep.subr.mxu0 0.0
        %1031 = vmatpush1.xpose.msra.mxu0 0.0
        %1032 = vmatprep.subr.mxu0 0.0
        %1033 = vmatpush1.xpose.msra.mxu0 0.0
        %1034 = vmatprep.subr.mxu0 0.0
        %1035 = vmatpush1.xpose.msra.mxu0 0.0
        %1036 = vmatprep.subr.mxu0 0.0
        %1037 = vmatpush1.xpose.msra.mxu0 0.0
        %1038 = vmatprep.subr.mxu0 0.0
        %1039 = vmatpush1.xpose.msra.mxu0 0.0
        %1040 = vmatprep.subr.mxu0 0.0
        %1041 = vmatpush1.xpose.msra.mxu0 0.0
        %1042 = vmatprep.subr.mxu0 0.0
        %1043 = vmatpush1.xpose.msra.mxu0 0.0
        %1044 = vmatprep.subr.mxu0 0.0
        %1045 = vmatpush1.xpose.msra.mxu0 0.0
        %1046 = vmatprep.subr.mxu0 0.0
        %1047 = vmatpush1.xpose.msra.mxu0 0.0
        %1048 = vmatprep.subr.mxu0 0.0
        %1049 = vmatpush1.xpose.msra.mxu0 0.0
        %1050 = vmatprep.subr.mxu0 0.0
        %1051 = vmatpush1.xpose.msra.mxu0 0.0
        %1052 = vmatprep.subr.mxu0 0.0
        %1053 = vmatpush1.xpose.msra.mxu0 0.0
        %1054 = vmatprep.subr.mxu0 0.0
        %1055 = vmatpush1.xpose.msra.mxu0 0.0
        %1056 = vmatprep.subr.mxu0 0.0
        %1057 = vmatpush1.xpose.msra.mxu0 0.0
        %1058 = vmatprep.subr.mxu0 0.0
        %1059 = vmatpush1.xpose.msra.mxu0 %v558
        %1060 = vmatprep.subr.mxu0 0.0
        %1061 = vmatpush2.xpose.msra.mxu0 0.0
        %1062 = vmatprep.subr.mxu0 0.0
        %1063 = vmatpush2.xpose.msra.mxu0 0.0
        %1064 = vmatprep.subr.mxu0 0.0
        %1065 = vmatpush2.xpose.msra.mxu0 0.0
        %1066 = vmatprep.subr.mxu0 0.0
        %1067 = vmatpush2.xpose.msra.mxu0 0.0
        %1068 = vmatprep.subr.mxu0 0.0
        %1069 = vmatpush2.xpose.msra.mxu0 0.0
        %1070 = vmatprep.subr.mxu0 0.0
        %1071 = vmatpush2.xpose.msra.mxu0 0.0
        %1072 = vmatprep.subr.mxu0 0.0
        %1073 = vmatpush2.xpose.msra.mxu0 0.0
        %1074 = vmatprep.subr.mxu0 0.0
        %1075 = vmatpush2.xpose.msra.mxu0 0.0
        %1076 = vmatprep.subr.mxu0 0.0
        %1077 = vmatpush2.xpose.msra.mxu0 0.0
        %1078 = vmatprep.subr.mxu0 0.0
        %1079 = vmatpush2.xpose.msra.mxu0 0.0
        %1080 = vmatprep.subr.mxu0 0.0
        %1081 = vmatpush2.xpose.msra.mxu0 0.0
        %1082 = vmatprep.subr.mxu0 0.0
        %1083 = vmatpush2.xpose.msra.mxu0 0.0
        %1084 = vmatprep.subr.mxu0 0.0
        %1085 = vmatpush2.xpose.msra.mxu0 0.0
        %1086 = vmatprep.subr.mxu0 0.0
        %1087 = vmatpush2.xpose.msra.mxu0 0.0
        %1088 = vmatprep.subr.mxu0 0.0
        %1089 = vmatpush2.xpose.msra.mxu0 0.0
        %1090 = vmatprep.subr.mxu0 0.0
        %1091 = vmatpush2.xpose.msra.mxu0 0.0
        %1092 = vmatprep.mubr.f32.mxu0 0.0
        %1093 = vmatmul.mubr.f32.gmra.mxu0 %v1020
        %v1094 = vpop.f32.mrf.mxu0
        %v1095 = vadd.f32 0.0, %v1094
        %v1096 = vpop.f32.mrf.mxu0
        %1097 = vdwg.mxu0
        %s1098 = scalar_lea.vmem [#allocation4], 16
        %v1099 = vld [vmem:[%s1098] sm:$0xff]
        %1101 = vset.pattern.permute.xlu0 0
        %1102 = vperm.xlu0 %1101, %v1012
        %v1103 = vpop.permute.xlu0 %1102
        %v1105 = vmul.f32 %v1103, %v1099
        %v1106 = vadd.f32 %v1105, %v1095
        %1107 = vst.msk [vmem:[%s1098] sm:$0xff] %vm575, %v1106
        %1108 = vst.msk [vmem:[%s1005] sm:$0xff] %vm669, %v1009
        %s1109 = scalar_lea.vmem %s2, 24
        %v1110 = vld [vmem:[%s1109] sm:$0xff]
        %v1112 = vsel %vm575, %v1110, 0
        %1114 = vmatprep.subr.mxu0 0.0
        %1115 = vmatpush1.msra.mxu0 0.0
        %1116 = vmatprep.subr.mxu0 0.0
        %1117 = vmatpush1.msra.mxu0 0.0
        %1118 = vmatprep.subr.mxu0 0.0
        %1119 = vmatpush1.msra.mxu0 0.0
        %1120 = vmatprep.subr.mxu0 0.0
        %1121 = vmatpush1.msra.mxu0 0.0
        %1122 = vmatprep.subr.mxu0 0.0
        %1123 = vmatpush1.msra.mxu0 0.0
        %1124 = vmatprep.subr.mxu0 0.0
        %1125 = vmatpush1.msra.mxu0 0.0
        %1126 = vmatprep.subr.mxu0 0.0
        %1127 = vmatpush1.msra.mxu0 0.0
        %1128 = vmatprep.subr.mxu0 0.0
        %1129 = vmatpush1.msra.mxu0 0.0
        %1130 = vmatprep.subr.mxu0 0.0
        %1131 = vmatpush1.msra.mxu0 0.0
        %1132 = vmatprep.subr.mxu0 0.0
        %1133 = vmatpush1.msra.mxu0 0.0
        %1134 = vmatprep.subr.mxu0 0.0
        %1135 = vmatpush1.msra.mxu0 0.0
        %1136 = vmatprep.subr.mxu0 0.0
        %1137 = vmatpush1.msra.mxu0 0.0
        %1138 = vmatprep.subr.mxu0 0.0
        %1139 = vmatpush1.msra.mxu0 0.0
        %1140 = vmatprep.subr.mxu0 0.0
        %1141 = vmatpush1.msra.mxu0 0.0
        %1142 = vmatprep.subr.mxu0 0.0
        %1143 = vmatpush1.msra.mxu0 0.0
        %1144 = vmatprep.subr.mxu0 0.0
        %1145 = vmatpush1.msra.mxu0 %v573
        %1146 = vmatprep.subr.mxu0 0.0
        %1147 = vmatpush2.msra.mxu0 0.0
        %1148 = vmatprep.subr.mxu0 0.0
        %1149 = vmatpush2.msra.mxu0 0.0
        %1150 = vmatprep.subr.mxu0 0.0
        %1151 = vmatpush2.msra.mxu0 0.0
        %1152 = vmatprep.subr.mxu0 0.0
        %1153 = vmatpush2.msra.mxu0 0.0
        %1154 = vmatprep.subr.mxu0 0.0
        %1155 = vmatpush2.msra.mxu0 0.0
        %1156 = vmatprep.subr.mxu0 0.0
        %1157 = vmatpush2.msra.mxu0 0.0
        %1158 = vmatprep.subr.mxu0 0.0
        %1159 = vmatpush2.msra.mxu0 0.0
        %1160 = vmatprep.subr.mxu0 0.0
        %1161 = vmatpush2.msra.mxu0 0.0
        %1162 = vmatprep.subr.mxu0 0.0
        %1163 = vmatpush2.msra.mxu0 0.0
        %1164 = vmatprep.subr.mxu0 0.0
        %1165 = vmatpush2.msra.mxu0 0.0
        %1166 = vmatprep.subr.mxu0 0.0
        %1167 = vmatpush2.msra.mxu0 0.0
        %1168 = vmatprep.subr.mxu0 0.0
        %1169 = vmatpush2.msra.mxu0 0.0
        %1170 = vmatprep.subr.mxu0 0.0
        %1171 = vmatpush2.msra.mxu0 0.0
        %1172 = vmatprep.subr.mxu0 0.0
        %1173 = vmatpush2.msra.mxu0 0.0
        %1174 = vmatprep.subr.mxu0 0.0
        %1175 = vmatpush2.msra.mxu0 0.0
        %1176 = vmatprep.subr.mxu0 0.0
        %1177 = vmatpush2.msra.mxu0 0.0
        %1178 = vmatprep.mubr.f32.mxu0 0.0
        %1179 = vmatmul.mubr.f32.gmra.mxu0 %v1112
        %v1180 = vpop.f32.mrf.mxu0
        %v1181 = vadd.f32 0.0, %v1180
        %v1182 = vpop.f32.mrf.mxu0
        %1183 = vdwg.mxu0
        %s1184 = scalar_lea.vmem [#allocation2], 24
        %v1185 = vld [vmem:[%s1184] sm:$0xff]
        %1186 = vmax.xlane.f32.xlu0 %v1181
        %v1187 = vpop.xlane.xlu0 %1186
        %v1188 = vmax.f32 %v1185, %v1187
        %v1189 = vsub.f32 %v1185, %v1188
        %v1190 = vmul.f32 %v1189, 1.442695
        %v1191 = vpow.pop %v1190
        %1193 = vset.pattern.permute.xlu0 0
        %1194 = vperm.xlu0 %1193, %v1188
        %v1195 = vpop.permute.xlu0 %1194
        %v1197 = vsub.f32 %v1181, %v1195
        %v1198 = vmul.f32 %v1197, 1.442695
        %v1199 = vpow.pop %v1198
        %s1200 = scalar_lea.vmem [#allocation3], 24
        %v1201 = vld [vmem:[%s1200] sm:$0xff]
        %v1202 = vmul.f32 %v1191, %v1201
        %1203 = vadd.xlane.f32.xlu0 %v1199
        %v1204 = vpop.xlane.xlu0 %1203
        %v1205 = vadd.f32 %v1202, %v1204
        %1206 = vst.msk [vmem:[%s1200] sm:$0xff] %vm669, %v1205
        %1207 = vmatprep.subr.mxu0 0.0
        %1208 = vmatpush1.xpose.msra.mxu0 0.0
        %1209 = vmatprep.subr.mxu0 0.0
        %1210 = vmatpush1.xpose.msra.mxu0 0.0
        %1211 = vmatprep.subr.mxu0 0.0
        %1212 = vmatpush1.xpose.msra.mxu0 0.0
        %1213 = vmatprep.subr.mxu0 0.0
        %1214 = vmatpush1.xpose.msra.mxu0 0.0
        %1215 = vmatprep.subr.mxu0 0.0
        %1216 = vmatpush1.xpose.msra.mxu0 0.0
        %1217 = vmatprep.subr.mxu0 0.0
        %1218 = vmatpush1.xpose.msra.mxu0 0.0
        %1219 = vmatprep.subr.mxu0 0.0
        %1220 = vmatpush1.xpose.msra.mxu0 0.0
        %1221 = vmatprep.subr.mxu0 0.0
        %1222 = vmatpush1.xpose.msra.mxu0 0.0
        %1223 = vmatprep.subr.mxu0 0.0
        %1224 = vmatpush1.xpose.msra.mxu0 0.0
        %1225 = vmatprep.subr.mxu0 0.0
        %1226 = vmatpush1.xpose.msra.mxu0 0.0
        %1227 = vmatprep.subr.mxu0 0.0
        %1228 = vmatpush1.xpose.msra.mxu0 0.0
        %1229 = vmatprep.subr.mxu0 0.0
        %1230 = vmatpush1.xpose.msra.mxu0 0.0
        %1231 = vmatprep.subr.mxu0 0.0
        %1232 = vmatpush1.xpose.msra.mxu0 0.0
        %1233 = vmatprep.subr.mxu0 0.0
        %1234 = vmatpush1.xpose.msra.mxu0 0.0
        %1235 = vmatprep.subr.mxu0 0.0
        %1236 = vmatpush1.xpose.msra.mxu0 0.0
        %1237 = vmatprep.subr.mxu0 0.0
        %1238 = vmatpush1.xpose.msra.mxu0 %v563
        %1239 = vmatprep.subr.mxu0 0.0
        %1240 = vmatpush2.xpose.msra.mxu0 0.0
        %1241 = vmatprep.subr.mxu0 0.0
        %1242 = vmatpush2.xpose.msra.mxu0 0.0
        %1243 = vmatprep.subr.mxu0 0.0
        %1244 = vmatpush2.xpose.msra.mxu0 0.0
        %1245 = vmatprep.subr.mxu0 0.0
        %1246 = vmatpush2.xpose.msra.mxu0 0.0
        %1247 = vmatprep.subr.mxu0 0.0
        %1248 = vmatpush2.xpose.msra.mxu0 0.0
        %1249 = vmatprep.subr.mxu0 0.0
        %1250 = vmatpush2.xpose.msra.mxu0 0.0
        %1251 = vmatprep.subr.mxu0 0.0
        %1252 = vmatpush2.xpose.msra.mxu0 0.0
        %1253 = vmatprep.subr.mxu0 0.0
        %1254 = vmatpush2.xpose.msra.mxu0 0.0
        %1255 = vmatprep.subr.mxu0 0.0
        %1256 = vmatpush2.xpose.msra.mxu0 0.0
        %1257 = vmatprep.subr.mxu0 0.0
        %1258 = vmatpush2.xpose.msra.mxu0 0.0
        %1259 = vmatprep.subr.mxu0 0.0
        %1260 = vmatpush2.xpose.msra.mxu0 0.0
        %1261 = vmatprep.subr.mxu0 0.0
        %1262 = vmatpush2.xpose.msra.mxu0 0.0
        %1263 = vmatprep.subr.mxu0 0.0
        %1264 = vmatpush2.xpose.msra.mxu0 0.0
        %1265 = vmatprep.subr.mxu0 0.0
        %1266 = vmatpush2.xpose.msra.mxu0 0.0
        %1267 = vmatprep.subr.mxu0 0.0
        %1268 = vmatpush2.xpose.msra.mxu0 0.0
        %1269 = vmatprep.subr.mxu0 0.0
        %1270 = vmatpush2.xpose.msra.mxu0 0.0
        %1271 = vmatprep.mubr.f32.mxu0 0.0
        %1272 = vmatmul.mubr.f32.gmra.mxu0 %v1199
        %v1273 = vpop.f32.mrf.mxu0
        %v1274 = vadd.f32 0.0, %v1273
        %v1275 = vpop.f32.mrf.mxu0
        %1276 = vdwg.mxu0
        %s1277 = scalar_lea.vmem [#allocation4], 24
        %v1278 = vld [vmem:[%s1277] sm:$0xff]
        %1280 = vset.pattern.permute.xlu0 0
        %1281 = vperm.xlu0 %1280, %v1191
        %v1282 = vpop.permute.xlu0 %1281
        %v1284 = vmul.f32 %v1282, %v1278
        %v1285 = vadd.f32 %v1284, %v1274
        %1286 = vst.msk [vmem:[%s1277] sm:$0xff] %vm575, %v1285
        %1287 = vst.msk [vmem:[%s1184] sm:$0xff] %vm669, %v1188
        %p1288 = scmp.eq.s32.totalorder %s30, 1
        // Predicated region
        $region103: #{tpu_custom_call.1} parent=81 // pred_check
          %p1289 = pneg %p1288
        $region104: #{tpu_custom_call.1} parent=81 // pred_check_branch
          %1291 = sbr.rel (%p1289) target = $region106
        $region105: #{tpu_custom_call.1} parent=81 // pred_region
          %v1292 = vld [vmem:[#allocation9] sm:$0xff]
          %v1293 = vld [vmem:[%s6] sm:$0x1]
          %v1294 = vld [vmem:[#allocation3] sm:$0xff]
          %v1295 = vrcp.pop %v1294
          %v1296 = vld [vmem:[#allocation4] sm:$0xff]
          %1298 = vset.pattern.permute.xlu0 0
          %1299 = vperm.xlu0 %1298, %v1295
          %v1300 = vpop.permute.xlu0 %1299
          %v1302 = vmul.f32 %v1296, %v1300
          %v1303 = vld [vmem:[#allocation11] sm:$0xff]
          %v1305 = vsel %vm575, %v1302, 0
          %1307 = vmatprep.subr.mxu0 0.0
          %1308 = vmatpush1.msra.mxu0 0.0
          %1309 = vmatprep.subr.mxu0 0.0
          %1310 = vmatpush1.msra.mxu0 0.0
          %1311 = vmatprep.subr.mxu0 0.0
          %1312 = vmatpush1.msra.mxu0 0.0
          %1313 = vmatprep.subr.mxu0 0.0
          %1314 = vmatpush1.msra.mxu0 0.0
          %1315 = vmatprep.subr.mxu0 0.0
          %1316 = vmatpush1.msra.mxu0 0.0
          %1317 = vmatprep.subr.mxu0 0.0
          %1318 = vmatpush1.msra.mxu0 0.0
          %1319 = vmatprep.subr.mxu0 0.0
          %1320 = vmatpush1.msra.mxu0 0.0
          %1321 = vmatprep.subr.mxu0 0.0
          %1322 = vmatpush1.msra.mxu0 0.0
          %1323 = vmatprep.subr.mxu0 0.0
          %1324 = vmatpush1.msra.mxu0 0.0
          %1325 = vmatprep.subr.mxu0 0.0
          %1326 = vmatpush1.msra.mxu0 0.0
          %1327 = vmatprep.subr.mxu0 0.0
          %1328 = vmatpush1.msra.mxu0 0.0
          %1329 = vmatprep.subr.mxu0 0.0
          %1330 = vmatpush1.msra.mxu0 0.0
          %1331 = vmatprep.subr.mxu0 0.0
          %1332 = vmatpush1.msra.mxu0 0.0
          %1333 = vmatprep.subr.mxu0 0.0
          %1334 = vmatpush1.msra.mxu0 0.0
          %1335 = vmatprep.subr.mxu0 0.0
          %1336 = vmatpush1.msra.mxu0 0.0
          %1337 = vmatprep.subr.mxu0 0.0
          %1338 = vmatpush1.msra.mxu0 %v1303
          %1339 = vmatprep.subr.mxu0 0.0
          %1340 = vmatpush2.msra.mxu0 0.0
          %1341 = vmatprep.subr.mxu0 0.0
          %1342 = vmatpush2.msra.mxu0 0.0
          %1343 = vmatprep.subr.mxu0 0.0
          %1344 = vmatpush2.msra.mxu0 0.0
          %1345 = vmatprep.subr.mxu0 0.0
          %1346 = vmatpush2.msra.mxu0 0.0
          %1347 = vmatprep.subr.mxu0 0.0
          %1348 = vmatpush2.msra.mxu0 0.0
          %1349 = vmatprep.subr.mxu0 0.0
          %1350 = vmatpush2.msra.mxu0 0.0
          %1351 = vmatprep.subr.mxu0 0.0
          %1352 = vmatpush2.msra.mxu0 0.0
          %1353 = vmatprep.subr.mxu0 0.0
          %1354 = vmatpush2.msra.mxu0 0.0
          %1355 = vmatprep.subr.mxu0 0.0
          %1356 = vmatpush2.msra.mxu0 0.0
          %1357 = vmatprep.subr.mxu0 0.0
          %1358 = vmatpush2.msra.mxu0 0.0
          %1359 = vmatprep.subr.mxu0 0.0
          %1360 = vmatpush2.msra.mxu0 0.0
          %1361 = vmatprep.subr.mxu0 0.0
          %1362 = vmatpush2.msra.mxu0 0.0
          %1363 = vmatprep.subr.mxu0 0.0
          %1364 = vmatpush2.msra.mxu0 0.0
          %1365 = vmatprep.subr.mxu0 0.0
          %1366 = vmatpush2.msra.mxu0 0.0
          %1367 = vmatprep.subr.mxu0 0.0
          %1368 = vmatpush2.msra.mxu0 0.0
          %1369 = vmatprep.subr.mxu0 0.0
          %1370 = vmatpush2.msra.mxu0 0.0
          %1371 = vmatprep.mubr.f32.mxu0 0.0
          %1372 = vmatmul.mubr.f32.gmra.mxu0 %v1305
          %v1373 = vpop.f32.mrf.mxu0
          %v1374 = vadd.f32 0.0, %v1373
          %v1375 = vpop.f32.mrf.mxu0
          %1376 = vdwg.mxu0
          %v1377 = vlaneseq
          %v1378 = vshrl.u32 %v1377, 7
          %v1379 = vsub.s32 0, %v1378
          %v1380 = vrot.slane %v1293, %v1379
          %v1381 = vadd.f32 %v1380, %v1374
          %v1382 = vld [vmem:[%s842] sm:$0xff]
          %v1383 = vrcp.pop %v1382
          %v1384 = vld [vmem:[%s919] sm:$0xff]
          %1386 = vset.pattern.permute.xlu0 0
          %1387 = vperm.xlu0 %1386, %v1383
          %v1388 = vpop.permute.xlu0 %1387
          %v1390 = vmul.f32 %v1384, %v1388
          %s1391 = scalar_lea.vmem [#allocation11], 8
          %v1392 = vld [vmem:[%s1391] sm:$0xff]
          %v1394 = vsel %vm575, %v1390, 0
          %1396 = vmatprep.subr.mxu0 0.0
          %1397 = vmatpush1.msra.mxu0 0.0
          %1398 = vmatprep.subr.mxu0 0.0
          %1399 = vmatpush1.msra.mxu0 0.0
          %1400 = vmatprep.subr.mxu0 0.0
          %1401 = vmatpush1.msra.mxu0 0.0
          %1402 = vmatprep.subr.mxu0 0.0
          %1403 = vmatpush1.msra.mxu0 0.0
          %1404 = vmatprep.subr.mxu0 0.0
          %1405 = vmatpush1.msra.mxu0 0.0
          %1406 = vmatprep.subr.mxu0 0.0
          %1407 = vmatpush1.msra.mxu0 0.0
          %1408 = vmatprep.subr.mxu0 0.0
          %1409 = vmatpush1.msra.mxu0 0.0
          %1410 = vmatprep.subr.mxu0 0.0
          %1411 = vmatpush1.msra.mxu0 0.0
          %1412 = vmatprep.subr.mxu0 0.0
          %1413 = vmatpush1.msra.mxu0 0.0
          %1414 = vmatprep.subr.mxu0 0.0
          %1415 = vmatpush1.msra.mxu0 0.0
          %1416 = vmatprep.subr.mxu0 0.0
          %1417 = vmatpush1.msra.mxu0 0.0
          %1418 = vmatprep.subr.mxu0 0.0
          %1419 = vmatpush1.msra.mxu0 0.0
          %1420 = vmatprep.subr.mxu0 0.0
          %1421 = vmatpush1.msra.mxu0 0.0
          %1422 = vmatprep.subr.mxu0 0.0
          %1423 = vmatpush1.msra.mxu0 0.0
          %1424 = vmatprep.subr.mxu0 0.0
          %1425 = vmatpush1.msra.mxu0 0.0
          %1426 = vmatprep.subr.mxu0 0.0
          %1427 = vmatpush1.msra.mxu0 %v1392
          %1428 = vmatprep.subr.mxu0 0.0
          %1429 = vmatpush2.msra.mxu0 0.0
          %1430 = vmatprep.subr.mxu0 0.0
          %1431 = vmatpush2.msra.mxu0 0.0
          %1432 = vmatprep.subr.mxu0 0.0
          %1433 = vmatpush2.msra.mxu0 0.0
          %1434 = vmatprep.subr.mxu0 0.0
          %1435 = vmatpush2.msra.mxu0 0.0
          %1436 = vmatprep.subr.mxu0 0.0
          %1437 = vmatpush2.msra.mxu0 0.0
          %1438 = vmatprep.subr.mxu0 0.0
          %1439 = vmatpush2.msra.mxu0 0.0
          %1440 = vmatprep.subr.mxu0 0.0
          %1441 = vmatpush2.msra.mxu0 0.0
          %1442 = vmatprep.subr.mxu0 0.0
          %1443 = vmatpush2.msra.mxu0 0.0
          %1444 = vmatprep.subr.mxu0 0.0
          %1445 = vmatpush2.msra.mxu0 0.0
          %1446 = vmatprep.subr.mxu0 0.0
          %1447 = vmatpush2.msra.mxu0 0.0
          %1448 = vmatprep.subr.mxu0 0.0
          %1449 = vmatpush2.msra.mxu0 0.0
          %1450 = vmatprep.subr.mxu0 0.0
          %1451 = vmatpush2.msra.mxu0 0.0
          %1452 = vmatprep.subr.mxu0 0.0
          %1453 = vmatpush2.msra.mxu0 0.0
          %1454 = vmatprep.subr.mxu0 0.0
          %1455 = vmatpush2.msra.mxu0 0.0
          %1456 = vmatprep.subr.mxu0 0.0
          %1457 = vmatpush2.msra.mxu0 0.0
          %1458 = vmatprep.subr.mxu0 0.0
          %1459 = vmatpush2.msra.mxu0 0.0
          %1460 = vmatprep.mubr.f32.mxu0 0.0
          %1461 = vmatmul.mubr.f32.gmra.mxu0 %v1394
          %v1462 = vpop.f32.mrf.mxu0
          %v1463 = vadd.f32 0.0, %v1462
          %v1464 = vpop.f32.mrf.mxu0
          %1465 = vdwg.mxu0
          %v1466 = vadd.f32 %v1381, %v1463
          %v1467 = vld [vmem:[%s1021] sm:$0xff]
          %v1468 = vrcp.pop %v1467
          %v1469 = vld [vmem:[%s1098] sm:$0xff]
          %1471 = vset.pattern.permute.xlu0 0
          %1472 = vperm.xlu0 %1471, %v1468
          %v1473 = vpop.permute.xlu0 %1472
          %v1475 = vmul.f32 %v1469, %v1473
          %s1476 = scalar_lea.vmem [#allocation11], 16
          %v1477 = vld [vmem:[%s1476] sm:$0xff]
          %v1479 = vsel %vm575, %v1475, 0
          %1481 = vmatprep.subr.mxu0 0.0
          %1482 = vmatpush1.msra.mxu0 0.0
          %1483 = vmatprep.subr.mxu0 0.0
          %1484 = vmatpush1.msra.mxu0 0.0
          %1485 = vmatprep.subr.mxu0 0.0
          %1486 = vmatpush1.msra.mxu0 0.0
          %1487 = vmatprep.subr.mxu0 0.0
          %1488 = vmatpush1.msra.mxu0 0.0
          %1489 = vmatprep.subr.mxu0 0.0
          %1490 = vmatpush1.msra.mxu0 0.0
          %1491 = vmatprep.subr.mxu0 0.0
          %1492 = vmatpush1.msra.mxu0 0.0
          %1493 = vmatprep.subr.mxu0 0.0
          %1494 = vmatpush1.msra.mxu0 0.0
          %1495 = vmatprep.subr.mxu0 0.0
          %1496 = vmatpush1.msra.mxu0 0.0
          %1497 = vmatprep.subr.mxu0 0.0
          %1498 = vmatpush1.msra.mxu0 0.0
          %1499 = vmatprep.subr.mxu0 0.0
          %1500 = vmatpush1.msra.mxu0 0.0
          %1501 = vmatprep.subr.mxu0 0.0
          %1502 = vmatpush1.msra.mxu0 0.0
          %1503 = vmatprep.subr.mxu0 0.0
          %1504 = vmatpush1.msra.mxu0 0.0
          %1505 = vmatprep.subr.mxu0 0.0
          %1506 = vmatpush1.msra.mxu0 0.0
          %1507 = vmatprep.subr.mxu0 0.0
          %1508 = vmatpush1.msra.mxu0 0.0
          %1509 = vmatprep.subr.mxu0 0.0
          %1510 = vmatpush1.msra.mxu0 0.0
          %1511 = vmatprep.subr.mxu0 0.0
          %1512 = vmatpush1.msra.mxu0 %v1477
          %1513 = vmatprep.subr.mxu0 0.0
          %1514 = vmatpush2.msra.mxu0 0.0
          %1515 = vmatprep.subr.mxu0 0.0
          %1516 = vmatpush2.msra.mxu0 0.0
          %1517 = vmatprep.subr.mxu0 0.0
          %1518 = vmatpush2.msra.mxu0 0.0
          %1519 = vmatprep.subr.mxu0 0.0
          %1520 = vmatpush2.msra.mxu0 0.0
          %1521 = vmatprep.subr.mxu0 0.0
          %1522 = vmatpush2.msra.mxu0 0.0
          %1523 = vmatprep.subr.mxu0 0.0
          %1524 = vmatpush2.msra.mxu0 0.0
          %1525 = vmatprep.subr.mxu0 0.0
          %1526 = vmatpush2.msra.mxu0 0.0
          %1527 = vmatprep.subr.mxu0 0.0
          %1528 = vmatpush2.msra.mxu0 0.0
          %1529 = vmatprep.subr.mxu0 0.0
          %1530 = vmatpush2.msra.mxu0 0.0
          %1531 = vmatprep.subr.mxu0 0.0
          %1532 = vmatpush2.msra.mxu0 0.0
          %1533 = vmatprep.subr.mxu0 0.0
          %1534 = vmatpush2.msra.mxu0 0.0
          %1535 = vmatprep.subr.mxu0 0.0
          %1536 = vmatpush2.msra.mxu0 0.0
          %1537 = vmatprep.subr.mxu0 0.0
          %1538 = vmatpush2.msra.mxu0 0.0
          %1539 = vmatprep.subr.mxu0 0.0
          %1540 = vmatpush2.msra.mxu0 0.0
          %1541 = vmatprep.subr.mxu0 0.0
          %1542 = vmatpush2.msra.mxu0 0.0
          %1543 = vmatprep.subr.mxu0 0.0
          %1544 = vmatpush2.msra.mxu0 0.0
          %1545 = vmatprep.mubr.f32.mxu0 0.0
          %1546 = vmatmul.mubr.f32.gmra.mxu0 %v1479
          %v1547 = vpop.f32.mrf.mxu0
          %v1548 = vadd.f32 0.0, %v1547
          %v1549 = vpop.f32.mrf.mxu0
          %1550 = vdwg.mxu0
          %v1551 = vadd.f32 %v1466, %v1548
          %v1552 = vld [vmem:[%s1200] sm:$0xff]
          %v1553 = vrcp.pop %v1552
          %v1554 = vld [vmem:[%s1277] sm:$0xff]
          %1556 = vset.pattern.permute.xlu0 0
          %1557 = vperm.xlu0 %1556, %v1553
          %v1558 = vpop.permute.xlu0 %1557
          %v1560 = vmul.f32 %v1554, %v1558
          %s1561 = scalar_lea.vmem [#allocation11], 24
          %v1562 = vld [vmem:[%s1561] sm:$0xff]
          %v1564 = vsel %vm575, %v1560, 0
          %1566 = vmatprep.subr.mxu0 0.0
          %1567 = vmatpush1.msra.mxu0 0.0
          %1568 = vmatprep.subr.mxu0 0.0
          %1569 = vmatpush1.msra.mxu0 0.0
          %1570 = vmatprep.subr.mxu0 0.0
          %1571 = vmatpush1.msra.mxu0 0.0
          %1572 = vmatprep.subr.mxu0 0.0
          %1573 = vmatpush1.msra.mxu0 0.0
          %1574 = vmatprep.subr.mxu0 0.0
          %1575 = vmatpush1.msra.mxu0 0.0
          %1576 = vmatprep.subr.mxu0 0.0
          %1577 = vmatpush1.msra.mxu0 0.0
          %1578 = vmatprep.subr.mxu0 0.0
          %1579 = vmatpush1.msra.mxu0 0.0
          %1580 = vmatprep.subr.mxu0 0.0
          %1581 = vmatpush1.msra.mxu0 0.0
          %1582 = vmatprep.subr.mxu0 0.0
          %1583 = vmatpush1.msra.mxu0 0.0
          %1584 = vmatprep.subr.mxu0 0.0
          %1585 = vmatpush1.msra.mxu0 0.0
          %1586 = vmatprep.subr.mxu0 0.0
          %1587 = vmatpush1.msra.mxu0 0.0
          %1588 = vmatprep.subr.mxu0 0.0
          %1589 = vmatpush1.msra.mxu0 0.0
          %1590 = vmatprep.subr.mxu0 0.0
          %1591 = vmatpush1.msra.mxu0 0.0
          %1592 = vmatprep.subr.mxu0 0.0
          %1593 = vmatpush1.msra.mxu0 0.0
          %1594 = vmatprep.subr.mxu0 0.0
          %1595 = vmatpush1.msra.mxu0 0.0
          %1596 = vmatprep.subr.mxu0 0.0
          %1597 = vmatpush1.msra.mxu0 %v1562
          %1598 = vmatprep.subr.mxu0 0.0
          %1599 = vmatpush2.msra.mxu0 0.0
          %1600 = vmatprep.subr.mxu0 0.0
          %1601 = vmatpush2.msra.mxu0 0.0
          %1602 = vmatprep.subr.mxu0 0.0
          %1603 = vmatpush2.msra.mxu0 0.0
          %1604 = vmatprep.subr.mxu0 0.0
          %1605 = vmatpush2.msra.mxu0 0.0
          %1606 = vmatprep.subr.mxu0 0.0
          %1607 = vmatpush2.msra.mxu0 0.0
          %1608 = vmatprep.subr.mxu0 0.0
          %1609 = vmatpush2.msra.mxu0 0.0
          %1610 = vmatprep.subr.mxu0 0.0
          %1611 = vmatpush2.msra.mxu0 0.0
          %1612 = vmatprep.subr.mxu0 0.0
          %1613 = vmatpush2.msra.mxu0 0.0
          %1614 = vmatprep.subr.mxu0 0.0
          %1615 = vmatpush2.msra.mxu0 0.0
          %1616 = vmatprep.subr.mxu0 0.0
          %1617 = vmatpush2.msra.mxu0 0.0
          %1618 = vmatprep.subr.mxu0 0.0
          %1619 = vmatpush2.msra.mxu0 0.0
          %1620 = vmatprep.subr.mxu0 0.0
          %1621 = vmatpush2.msra.mxu0 0.0
          %1622 = vmatprep.subr.mxu0 0.0
          %1623 = vmatpush2.msra.mxu0 0.0
          %1624 = vmatprep.subr.mxu0 0.0
          %1625 = vmatpush2.msra.mxu0 0.0
          %1626 = vmatprep.subr.mxu0 0.0
          %1627 = vmatpush2.msra.mxu0 0.0
          %1628 = vmatprep.subr.mxu0 0.0
          %1629 = vmatpush2.msra.mxu0 0.0
          %1630 = vmatprep.mubr.f32.mxu0 0.0
          %1631 = vmatmul.mubr.f32.gmra.mxu0 %v1564
          %v1632 = vpop.f32.mrf.mxu0
          %v1633 = vadd.f32 0.0, %v1632
          %v1634 = vpop.f32.mrf.mxu0
          %1635 = vdwg.mxu0
          %v1636 = vadd.f32 %v1551, %v1633
          %v1637 = vadd.f32 %v1292, %v1636
          %v1638 = vsel %vm436, %v1637, 0.0
          %1639 = vadd.xlane.f32.xlu0 %v1638
          %v1640 = vpop.xlane.xlu0 %1639
          %v1641 = vrcp.pop 32.0
          %v1642 = vmul.f32 %v1640, %v1641
          %v1643 = vsub.f32 %v1637, %v1642
          %v1644 = vmul.f32 %v1643, %v1643
          %v1645 = vsel %vm436, %v1644, 0.0
          %1646 = vadd.xlane.f32.xlu0 %v1645
          %v1647 = vpop.xlane.xlu0 %1646
          %v1648 = vmul.f32 %v1647, %v1641
          %v1649 = vadd.f32 %v1648, 1e-05
          %v1650 = vrsqrt.pop %v1649
          %v1651 = vmul.f32 %v1643, %v1650
          %v1652 = vld [vmem:[%s6 + $0x1] sm:$0x1]
          %v1653 = vlaneseq
          %v1654 = vshrl.u32 %v1653, 7
          %v1655 = vsub.s32 0, %v1654
          %v1656 = vrot.slane %v1652, %v1655
          %v1657 = vmul.f32 %v1651, %v1656
          %v1658 = vld [vmem:[%s6 + $0x2] sm:$0x1]
          %v1659 = vlaneseq
          %v1660 = vshrl.u32 %v1659, 7
          %v1661 = vsub.s32 0, %v1660
          %v1662 = vrot.slane %v1658, %v1661
          %v1663 = vadd.f32 %v1657, %v1662
          %1664 = vst.msk [vmem:[%s405] sm:$0xff] %vm436, %v1663
        $region106: #{tpu_custom_call.1} parent=81 // pred_fallthru
          _
        %s1665 = sand.u32 %s204, 1
        %s1666 = scalar_lea.sflag [#allocation7], %s1665
        %s1667 = sand.u32 %s204, 1
        %s1668 = smul.addr %s1667, 8
        %s1669 = scalar_lea.vmem [#allocation12], %s1668
        // Predicated region
        $region107: #{tpu_custom_call.1} parent=81 // pred_check
          %p1670 = pneg %p214
        $region108: #{tpu_custom_call.1} parent=81 // pred_check_branch
          %1672 = sbr.rel (%p1670) target = $region110
        $region109: #{tpu_custom_call.1} parent=81 // pred_region
          %s1674 = ssub.s32 128, 128
          %1675 = vsyncadd %s1666, %s1674
          %s1676 = smul.addr %s29, 128
          %s1677 = scalar_lea.hbm %s7, %s1676
          %s1679 = sshll.u32 %s1669, 4
          %s1680 = int_to_ptr.vmem [resolvable:$true] %s1679
          %1682 = dma.vmem_to_hbm [thread:$0]  %s1680, 128, %s1677, %s1666
        $region110: #{tpu_custom_call.1} parent=81 // pred_fallthru
          _
      $region82: #{tpu_custom_call.1} parent=5 // pred_fallthru
        _
      %p1683 = scmp.le.s32.totalorder 2, %s20
      // Predicated region
      $region111: #{tpu_custom_call.1} parent=5 // pred_check
        %p1684 = pneg %p1683
      $region112: #{tpu_custom_call.1} parent=5 // pred_check_branch
        %1686 = sbr.rel (%p1684) target = $region114
      $region113: #{tpu_custom_call.1} parent=5 // pred_region
        %s1687 = ssub.s32 %s20, 2
        // Predicated region
        $region115: #{tpu_custom_call.1} parent=113 // pred_check
          %p1688 = pneg %p220
        $region116: #{tpu_custom_call.1} parent=113 // pred_check_branch
          %1690 = sbr.rel (%p1688) target = $region118
        $region117: #{tpu_custom_call.1} parent=113 // pred_region
          %s1691 = sand.u32 %s205, 1
          %s1692 = scalar_lea.sflag [#allocation7], %s1691
          %s1693 = sand.u32 %s205, 1
          %s1694 = smul.addr %s1693, 8
          %s1695 = scalar_lea.vmem [#allocation12], %s1694
          %1696 = dma.done %s1692, 128
        $region118: #{tpu_custom_call.1} parent=113 // pred_fallthru
          _
      $region114: #{tpu_custom_call.1} parent=5 // pred_fallthru
        _
    $region6: #{tpu_custom_call.1} parent=1 // loop_footer
      %s24 = sadd.s32 1, %s20
    $region7: #{tpu_custom_call.1} parent=1 // loop_footer_branch
      %19 = sbr.rel target = $region3
    $region8: #{tpu_custom_call.1} parent=1 // loop_exit
      _
    %1697 = vsyncpa [#allocation6], 1
    %s1698 = scalar_lea.sflag [#allocation6], 1
    %1699 = vsyncpa %s1698, 1
    %1700 = vsyncpa [#allocation10], 1
    %1701 = vsyncpa [#allocation7], 1
    %s1702 = scalar_lea.sflag [#allocation7], 1
    %1703 = vsyncpa %s1702, 1

</llo_original>
